<compile_context>
chip_gen: v7x
topology: tpu7x:2x2x1
jax: 0.10.0
libtpu: 0.0.40
codegen_flags: <defaults>
</compile_context>

<pallas_src>
import functools

import jax
import jax.numpy as jnp
from jax.experimental import pallas as pl
from jax.experimental.pallas import tpu as pltpu

NEG_SLOPE = 0.01  # nn.LeakyReLU() default negative slope


def _fused_kernel(x_ref, w1_ref, b1_ref, w2_ref, b2_ref, w3_ref, b3_ref,
                  *out_and_scratch, H, W, chans):
    """Fused conv1+conv2+conv5 (+ LeakyReLU each) for one batch element.

    x_ref  : (Cin, H*W)        bf16 lane-dense input plane stack
    wK_ref : (3, Cout, 3*Cin)  bf16 per-kernel-column weight matrices (cols = dy-major, Cin-minor)
    bK_ref : (Cout, 1)         f32 biases
    out[c] : (1, H*W)          per-channel lane-dense outputs (8 of them)
    scr    : (Cmax, 2*(W+1)+H*W) bf16 zero-padded activation scratch
    """
    out_refs = out_and_scratch[:8]
    scr_ref = out_and_scratch[8]
    hw = H * W
    pad = W + 1
    cmax = scr_ref.shape[0]

    # Zero ONLY the two pad bands (staging / layer writes never touch them).
    scr_ref[:, 0:pad] = jnp.zeros((cmax, pad), scr_ref.dtype)
    scr_ref[:, pad + hw:2 * pad + hw] = jnp.zeros((cmax, pad), scr_ref.dtype)

    # Two x-edge masks generated in-kernel; vertical OOB reads land in the zero pad bands.
    col = jax.lax.broadcasted_iota(jnp.int32, (1, hw), 1)
    cmod = col % W
    mask_l = (cmod != 0).astype(jnp.float32)       # dx = 0 taps read column c-1
    mask_r = (cmod != W - 1).astype(jnp.float32)   # dx = 2 taps read column c+1

    # Stage the input planes into the padded, lane-flat scratch.
    scr_ref[0:chans[0], pad:pad + hw] = x_ref[...].astype(scr_ref.dtype)

    def dx_group(cin, w_ref, g):
        # RHS = the three dy taps of kernel column g, stacked dy-major: (3*cin, hw).
        d = g - 1
        rows = [scr_ref[0:cin, pad + (dy - 1) * W + d: pad + (dy - 1) * W + d + hw]
                for dy in range(3)]
        rhs = jnp.concatenate(rows, axis=0)
        return jnp.dot(w_ref[g], rhs, preferred_element_type=jnp.float32)

    def conv_layer(cin, cout, w_ref, b_ref, write_out):
        # 3 contractions/layer (K = 3*Cin); x-edge masks applied once per (Cout, HW) partial.
        acc = dx_group(cin, w_ref, 1)                          # center column: never masked
        acc = acc + dx_group(cin, w_ref, 0) * mask_l
        acc = acc + dx_group(cin, w_ref, 2) * mask_r
        acc = acc + b_ref[...]                                 # (cout, 1) f32 lane broadcast
        y = jnp.maximum(acc, NEG_SLOPE * acc)                  # LeakyReLU
        if write_out:
            for c in range(8):                                 # direct per-channel stores
                out_refs[c][...] = y[c:c + 1, :].astype(out_refs[c].dtype)
        else:
            scr_ref[0:cout, pad:pad + hw] = y.astype(scr_ref.dtype)

    conv_layer(chans[0], chans[1], w1_ref, b1_ref, False)      # conv1 + leaky
    conv_layer(chans[1], chans[2], w2_ref, b2_ref, False)      # conv2 + leaky
    conv_layer(chans[2], chans[3], w3_ref, b3_ref, True)       # conv5 + leaky


def _prep_layer(w, b, compute_dtype):
    """(kh, kw, Cin, Cout) -> (kw, Cout, kh*Cin) per-dx-column matrices; bias -> (Cout, 1) f32."""
    kh, kw, cin, cout = w.shape
    wt = jnp.transpose(w, (1, 3, 0, 2)).reshape(kw, cout, kh * cin).astype(compute_dtype)
    return wt, b.reshape(cout, 1).astype(jnp.float32)


def init_params(in_channels, key):
    """Deterministic, PyTorch-default-style init (uniform +- 1/sqrt(fan_in))."""
    specs = [(in_channels, 4), (4, 8), (8, 8)]   # conv1, conv2, conv5
    params = []
    for cin, cout in specs:
        key, kw, kb = jax.random.split(key, 3)
        bound = 1.0 / jnp.sqrt(cin * 3 * 3)
        w = jax.random.uniform(kw, (3, 3, cin, cout), jnp.float32, -bound, bound)
        b = jax.random.uniform(kb, (cout,), jnp.float32, -bound, bound)
        params.append((w, b))
    return params


@jax.jit
def low_enhance_net(x_nchw, params):
    """Forward pass matching the PyTorch module. Input NCHW; returns list of 8 (N,1,H,W)."""
    N, Cin, H, W = x_nchw.shape
    hw = H * W
    pad = W + 1
    chans = (Cin, 4, 8, 8)
    cmax = max(chans)
    compute_dtype = jnp.bfloat16
    out_dtype = x_nchw.dtype
    out_item = jnp.dtype(out_dtype).itemsize

    x_flat = x_nchw.reshape(N, Cin, hw).astype(compute_dtype)   # free reshape + cheap cast
    (w1, b1), (w2, b2), (w3, b3) = params
    w1t, b1t = _prep_layer(w1, b1, compute_dtype)
    w2t, b2t = _prep_layer(w2, b2, compute_dtype)
    w3t, b3t = _prep_layer(w3, b3, compute_dtype)
    wb_bytes = sum(int(a.size) * a.dtype.itemsize for a in (w1t, b1t, w2t, b2t, w3t, b3t))

    flops = 2 * N * hw * 9 * (chans[0] * chans[1] + chans[1] * chans[2] + chans[2] * chans[3])
    bytes_accessed = N * Cin * hw * 2 + N * 8 * hw * out_item + wb_bytes

    # Explicit VMEM cap: scratch + double-buffered blocks + headroom, clamped to chip limits.
    block_bytes = (cmax * (2 * pad + hw) * 2          # activation scratch (bf16)
                   + 2 * Cin * hw * 2                 # input block, double-buffered
                   + 2 * 8 * hw * out_item            # 8 output blocks, double-buffered
                   + 2 * wb_bytes)
    vmem_limit = int(min(64 << 20, max(8 << 20, 4 * block_bytes)))

    kernel = functools.partial(_fused_kernel, H=H, W=W, chans=chans)

    outs = pl.pallas_call(
        kernel,
        out_shape=tuple(jax.ShapeDtypeStruct((N, 1, hw), out_dtype) for _ in range(8)),
        grid=(N,),
        in_specs=[
            pl.BlockSpec((None, Cin, hw), lambda n: (n, 0, 0)),              # x (one image/step)
            pl.BlockSpec((3, chans[1], 3 * chans[0]), lambda n: (0, 0, 0)),  # w1
            pl.BlockSpec((chans[1], 1), lambda n: (0, 0)),                   # b1
            pl.BlockSpec((3, chans[2], 3 * chans[1]), lambda n: (0, 0, 0)),  # w2
            pl.BlockSpec((chans[2], 1), lambda n: (0, 0)),                   # b2
            pl.BlockSpec((3, chans[3], 3 * chans[2]), lambda n: (0, 0, 0)),  # w5
            pl.BlockSpec((chans[3], 1), lambda n: (0, 0)),                   # b5
        ],
        out_specs=tuple(pl.BlockSpec((None, 1, hw), lambda n: (n, 0, 0)) for _ in range(8)),
        scratch_shapes=[pltpu.VMEM((cmax, 2 * pad + hw), compute_dtype)],
        compiler_params=pltpu.CompilerParams(
            dimension_semantics=("parallel",),
            vmem_limit_bytes=vmem_limit),
        cost_estimate=pl.CostEstimate(flops=flops, transcendentals=0,
                                      bytes_accessed=bytes_accessed),
    )(x_flat, w1t, b1t, w2t, b2t, w3t, b3t)

    # Free reshapes; the torch.split is realized by the 8 separate kernel outputs (no copies).
    return [o.reshape(N, 1, H, W) for o in outs]


def _reference(x_nchw, params):
    """Pure-JAX reference (lax conv) for a correctness sanity check."""
    x = x_nchw
    for (w, b) in params:
        w_oihw = jnp.transpose(w, (3, 2, 0, 1))    # (kh,kw,Cin,Cout) -> (O,I,kh,kw)
        y = jax.lax.conv_general_dilated(
            x, w_oihw, window_strides=(1, 1), padding=((1, 1), (1, 1)),
            dimension_numbers=("NCHW", "OIHW", "NCHW"))
        y = y + b.reshape(1, -1, 1, 1)
        x = jnp.maximum(y, NEG_SLOPE * y)
    return [x[:, c:c + 1, :, :] for c in range(8)]


if __name__ == "__main__":
    key = jax.random.PRNGKey(0)
    k_x, k_p = jax.random.split(key)

    N, C, H, W = 2, 4, 16, 16
    x = jax.random.normal(k_x, (N, C, H, W), jnp.float32)
    params = init_params(C, k_p)

    outs = low_enhance_net(x, params)
    outs = jax.block_until_ready(outs)

    # Reference with inputs/weights pre-quantized to bf16 (the kernel stores them in bf16),
    # tolerance loosened accordingly for the bf16 intermediate activations.
    def _q(a):
        return a.astype(jnp.bfloat16).astype(jnp.float32)

    refs = _reference(_q(x), [(_q(w), b) for (w, b) in params])
    for o, r in zip(outs, refs):
        assert o.shape == (N, 1, H, W)
        assert jnp.allclose(o, r, atol=2e-2, rtol=2e-2), "mismatch vs reference conv"

    print("KERNEL_OK")
</pallas_src>

<mosaic_0001>
module attributes {stable_mosaic.version = 11 : i64} {
  func.func @_fused_kernel(%arg0: i32, %arg1: memref<1x4x256xbf16, #tpu.memory_space<vmem>>, %arg2: memref<3x4x12xbf16, #tpu.memory_space<vmem>>, %arg3: memref<4x1xf32, #tpu.memory_space<vmem>>, %arg4: memref<3x8x12xbf16, #tpu.memory_space<vmem>>, %arg5: memref<8x1xf32, #tpu.memory_space<vmem>>, %arg6: memref<3x8x24xbf16, #tpu.memory_space<vmem>>, %arg7: memref<8x1xf32, #tpu.memory_space<vmem>>, %arg8: memref<1x1x256xf32, #tpu.memory_space<vmem>>, %arg9: memref<1x1x256xf32, #tpu.memory_space<vmem>>, %arg10: memref<1x1x256xf32, #tpu.memory_space<vmem>>, %arg11: memref<1x1x256xf32, #tpu.memory_space<vmem>>, %arg12: memref<1x1x256xf32, #tpu.memory_space<vmem>>, %arg13: memref<1x1x256xf32, #tpu.memory_space<vmem>>, %arg14: memref<1x1x256xf32, #tpu.memory_space<vmem>>, %arg15: memref<1x1x256xf32, #tpu.memory_space<vmem>>, %arg16: memref<8x290xbf16, #tpu.memory_space<vmem>>) attributes {dimension_semantics = [#tpu.dimension_semantics<parallel>], iteration_bounds = array<i64: 2>, scalar_prefetch = 0 : i64, scratch_operands = 1 : i64, tpu.core_type = #tpu.core_type<tc>, window_params = [{transform_indices = @transform_0, window_bounds = array<i64: 1, 4, 256>}, {pipeline_mode = #tpu.pipeline_mode<synchronous>, transform_indices = @transform_1, window_bounds = array<i64: 3, 4, 12>}, {pipeline_mode = #tpu.pipeline_mode<synchronous>, transform_indices = @transform_2, window_bounds = array<i64: 4, 1>}, {pipeline_mode = #tpu.pipeline_mode<synchronous>, transform_indices = @transform_3, window_bounds = array<i64: 3, 8, 12>}, {pipeline_mode = #tpu.pipeline_mode<synchronous>, transform_indices = @transform_4, window_bounds = array<i64: 8, 1>}, {pipeline_mode = #tpu.pipeline_mode<synchronous>, transform_indices = @transform_5, window_bounds = array<i64: 3, 8, 24>}, {pipeline_mode = #tpu.pipeline_mode<synchronous>, transform_indices = @transform_6, window_bounds = array<i64: 8, 1>}, {transform_indices = @transform_7, window_bounds = array<i64: 1, 1, 256>}, {transform_indices = @transform_8, window_bounds = array<i64: 1, 1, 256>}, {transform_indices = @transform_9, window_bounds = array<i64: 1, 1, 256>}, {transform_indices = @transform_10, window_bounds = array<i64: 1, 1, 256>}, {transform_indices = @transform_11, window_bounds = array<i64: 1, 1, 256>}, {transform_indices = @transform_12, window_bounds = array<i64: 1, 1, 256>}, {transform_indices = @transform_13, window_bounds = array<i64: 1, 1, 256>}, {transform_indices = @transform_14, window_bounds = array<i64: 1, 1, 256>}]} {
    %cst = arith.constant 0.000000e+00 : bf16
    %0 = vector.broadcast %cst : bf16 to vector<8x17xbf16>
    %c0 = arith.constant 0 : index
    %c0_0 = arith.constant 0 : index
    %1 = vector.load %arg16[%c0, %c0_0] : memref<8x290xbf16, #tpu.memory_space<vmem>>, vector<8x17xbf16>
    tpu.vector_store %arg16[%c0, %c0_0], %0 {strides = array<i32>} : memref<8x290xbf16, #tpu.memory_space<vmem>>, vector<8x17xbf16>,
    %cst_1 = arith.constant 0.000000e+00 : bf16
    %2 = vector.broadcast %cst_1 : bf16 to vector<8x17xbf16>
    %c0_2 = arith.constant 0 : index
    %c273 = arith.constant 273 : index
    %3 = vector.load %arg16[%c0_2, %c273] : memref<8x290xbf16, #tpu.memory_space<vmem>>, vector<8x17xbf16>
    tpu.vector_store %arg16[%c0_2, %c273], %2 {strides = array<i32>} : memref<8x290xbf16, #tpu.memory_space<vmem>>, vector<8x17xbf16>,
    %4 = tpu.iota {dimensions = array<i32: 1>} : vector<1x256xi32>
    %c16_i32 = arith.constant 16 : i32
    %c0_i32 = arith.constant 0 : i32
    %5 = arith.cmpi eq, %c16_i32, %c0_i32 : i32
    %c1_i32 = arith.constant 1 : i32
    %6 = arith.select %5, %c1_i32, %c16_i32 : i32
    %7 = vector.broadcast %6 : i32 to vector<1x256xi32>
    %8 = arith.remsi %4, %7 : vector<1x256xi32>
    %c0_i32_3 = arith.constant 0 : i32
    %9 = vector.broadcast %c0_i32_3 : i32 to vector<1x256xi32>
    %10 = arith.cmpi ne, %8, %9 : vector<1x256xi32>
    %c0_i32_4 = arith.constant 0 : i32
    %11 = vector.broadcast %c0_i32_4 : i32 to vector<1x256xi32>
    %12 = arith.cmpi slt, %8, %11 : vector<1x256xi32>
    %c0_i32_5 = arith.constant 0 : i32
    %13 = arith.cmpi slt, %6, %c0_i32_5 : i32
    %14 = vector.broadcast %13 : i1 to vector<1x256xi1>
    %15 = vector.broadcast %14 : vector<1x256xi1> to vector<1x256xi1>
    %16 = arith.xori %12, %15 : vector<1x256xi1>
    %17 = arith.andi %16, %10 : vector<1x256xi1>
    %18 = vector.broadcast %6 : i32 to vector<1x256xi32>
    %19 = arith.addi %8, %18 : vector<1x256xi32>
    %20 = arith.select %17, %19, %8 : vector<1x256xi1>, vector<1x256xi32>
    %c0_i32_6 = arith.constant 0 : i32
    %21 = vector.broadcast %c0_i32_6 : i32 to vector<1x256xi32>
    %22 = arith.cmpi ne, %20, %21 : vector<1x256xi32>
    %23 = arith.extui %22 : vector<1x256xi1> to vector<1x256xi32>
    %24 = arith.sitofp %23 : vector<1x256xi32> to vector<1x256xf32>
    %c15_i32 = arith.constant 15 : i32
    %25 = vector.broadcast %c15_i32 : i32 to vector<1x256xi32>
    %26 = arith.cmpi ne, %20, %25 : vector<1x256xi32>
    %27 = arith.extui %26 : vector<1x256xi1> to vector<1x256xi32>
    %28 = arith.sitofp %27 : vector<1x256xi32> to vector<1x256xf32>
    %c0_7 = arith.constant 0 : index
    %c0_8 = arith.constant 0 : index
    %c0_9 = arith.constant 0 : index
    %29 = vector.load %arg1[%c0_7, %c0_8, %c0_9] : memref<1x4x256xbf16, #tpu.memory_space<vmem>>, vector<1x4x256xbf16>
    %30 = vector.shape_cast %29 : vector<1x4x256xbf16> to vector<4x256xbf16>
    %c0_10 = arith.constant 0 : index
    %c17 = arith.constant 17 : index
    %31 = vector.load %arg16[%c0_10, %c17] : memref<8x290xbf16, #tpu.memory_space<vmem>>, vector<4x256xbf16>
    tpu.vector_store %arg16[%c0_10, %c17], %30 {strides = array<i32>} : memref<8x290xbf16, #tpu.memory_space<vmem>>, vector<4x256xbf16>,
    %c0_11 = arith.constant 0 : index
    %c1 = arith.constant 1 : index
    %32 = vector.load %arg16[%c0_11, %c1] : memref<8x290xbf16, #tpu.memory_space<vmem>>, vector<4x256xbf16>
    %c0_12 = arith.constant 0 : index
    %c17_13 = arith.constant 17 : index
    %33 = vector.load %arg16[%c0_12, %c17_13] : memref<8x290xbf16, #tpu.memory_space<vmem>>, vector<4x256xbf16>
    %c0_14 = arith.constant 0 : index
    %c33 = arith.constant 33 : index
    %34 = vector.load %arg16[%c0_14, %c33] : memref<8x290xbf16, #tpu.memory_space<vmem>>, vector<4x256xbf16>
    %35 = tpu.concatenate %32, %33, %34 in 0 : vector<4x256xbf16>, vector<4x256xbf16>, vector<4x256xbf16> -> vector<12x256xbf16>
    %c1_15 = arith.constant 1 : index
    %c0_16 = arith.constant 0 : index
    %c0_17 = arith.constant 0 : index
    %36 = vector.load %arg2[%c1_15, %c0_16, %c0_17] : memref<3x4x12xbf16, #tpu.memory_space<vmem>>, vector<1x4x12xbf16>
    %37 = vector.shape_cast %36 : vector<1x4x12xbf16> to vector<4x12xbf16>
    %cst_18 = arith.constant dense<0.000000e+00> : vector<4x256xf32>
    %38 = tpu.matmul %37, %35, %cst_18 {dimension_numbers = #tpu.dot_dimension_numbers<[1], [0], [0], [1], [0, 0, 1, 1], [], []>} : vector<4x12xbf16>, vector<12x256xbf16>, vector<4x256xf32> -> vector<4x256xf32>
    %c0_19 = arith.constant 0 : index
    %c0_20 = arith.constant 0 : index
    %39 = vector.load %arg16[%c0_19, %c0_20] : memref<8x290xbf16, #tpu.memory_space<vmem>>, vector<4x256xbf16>
    %c0_21 = arith.constant 0 : index
    %c16 = arith.constant 16 : index
    %40 = vector.load %arg16[%c0_21, %c16] : memref<8x290xbf16, #tpu.memory_space<vmem>>, vector<4x256xbf16>
    %c0_22 = arith.constant 0 : index
    %c32 = arith.constant 32 : index
    %41 = vector.load %arg16[%c0_22, %c32] : memref<8x290xbf16, #tpu.memory_space<vmem>>, vector<4x256xbf16>
    %42 = tpu.concatenate %39, %40, %41 in 0 : vector<4x256xbf16>, vector<4x256xbf16>, vector<4x256xbf16> -> vector<12x256xbf16>
    %c0_23 = arith.constant 0 : index
    %c0_24 = arith.constant 0 : index
    %c0_25 = arith.constant 0 : index
    %43 = vector.load %arg2[%c0_23, %c0_24, %c0_25] : memref<3x4x12xbf16, #tpu.memory_space<vmem>>, vector<1x4x12xbf16>
    %44 = vector.shape_cast %43 : vector<1x4x12xbf16> to vector<4x12xbf16>
    %cst_26 = arith.constant dense<0.000000e+00> : vector<4x256xf32>
    %45 = tpu.matmul %44, %42, %cst_26 {dimension_numbers = #tpu.dot_dimension_numbers<[1], [0], [0], [1], [0, 0, 1, 1], [], []>} : vector<4x12xbf16>, vector<12x256xbf16>, vector<4x256xf32> -> vector<4x256xf32>
    %46 = vector.broadcast %24 : vector<1x256xf32> to vector<4x256xf32>
    %47 = arith.mulf %45, %46 : vector<4x256xf32>
    %48 = arith.addf %38, %47 : vector<4x256xf32>
    %c0_27 = arith.constant 0 : index
    %c2 = arith.constant 2 : index
    %49 = vector.load %arg16[%c0_27, %c2] : memref<8x290xbf16, #tpu.memory_space<vmem>>, vector<4x256xbf16>
    %c0_28 = arith.constant 0 : index
    %c18 = arith.constant 18 : index
    %50 = vector.load %arg16[%c0_28, %c18] : memref<8x290xbf16, #tpu.memory_space<vmem>>, vector<4x256xbf16>
    %c0_29 = arith.constant 0 : index
    %c34 = arith.constant 34 : index
    %51 = vector.load %arg16[%c0_29, %c34] : memref<8x290xbf16, #tpu.memory_space<vmem>>, vector<4x256xbf16>
    %52 = tpu.concatenate %49, %50, %51 in 0 : vector<4x256xbf16>, vector<4x256xbf16>, vector<4x256xbf16> -> vector<12x256xbf16>
    %c2_30 = arith.constant 2 : index
    %c0_31 = arith.constant 0 : index
    %c0_32 = arith.constant 0 : index
    %53 = vector.load %arg2[%c2_30, %c0_31, %c0_32] : memref<3x4x12xbf16, #tpu.memory_space<vmem>>, vector<1x4x12xbf16>
    %54 = vector.shape_cast %53 : vector<1x4x12xbf16> to vector<4x12xbf16>
    %cst_33 = arith.constant dense<0.000000e+00> : vector<4x256xf32>
    %55 = tpu.matmul %54, %52, %cst_33 {dimension_numbers = #tpu.dot_dimension_numbers<[1], [0], [0], [1], [0, 0, 1, 1], [], []>} : vector<4x12xbf16>, vector<12x256xbf16>, vector<4x256xf32> -> vector<4x256xf32>
    %56 = vector.broadcast %28 : vector<1x256xf32> to vector<4x256xf32>
    %57 = arith.mulf %55, %56 : vector<4x256xf32>
    %58 = arith.addf %48, %57 : vector<4x256xf32>
    %c0_34 = arith.constant 0 : index
    %c0_35 = arith.constant 0 : index
    %59 = vector.load %arg3[%c0_34, %c0_35] : memref<4x1xf32, #tpu.memory_space<vmem>>, vector<4x1xf32>
    %60 = vector.broadcast %59 : vector<4x1xf32> to vector<4x256xf32>
    %61 = arith.addf %58, %60 : vector<4x256xf32>
    %cst_36 = arith.constant 0.00999999977 : f32
    %62 = vector.broadcast %cst_36 : f32 to vector<4x256xf32>
    %63 = arith.mulf %62, %61 : vector<4x256xf32>
    %64 = arith.maximumf %61, %63 : vector<4x256xf32>
    %65 = arith.truncf %64 : vector<4x256xf32> to vector<4x256xbf16>
    %c0_37 = arith.constant 0 : index
    %c17_38 = arith.constant 17 : index
    %66 = vector.load %arg16[%c0_37, %c17_38] : memref<8x290xbf16, #tpu.memory_space<vmem>>, vector<4x256xbf16>
    tpu.vector_store %arg16[%c0_37, %c17_38], %65 {strides = array<i32>} : memref<8x290xbf16, #tpu.memory_space<vmem>>, vector<4x256xbf16>,
    %c0_39 = arith.constant 0 : index
    %c1_40 = arith.constant 1 : index
    %67 = vector.load %arg16[%c0_39, %c1_40] : memref<8x290xbf16, #tpu.memory_space<vmem>>, vector<4x256xbf16>
    %c0_41 = arith.constant 0 : index
    %c17_42 = arith.constant 17 : index
    %68 = vector.load %arg16[%c0_41, %c17_42] : memref<8x290xbf16, #tpu.memory_space<vmem>>, vector<4x256xbf16>
    %c0_43 = arith.constant 0 : index
    %c33_44 = arith.constant 33 : index
    %69 = vector.load %arg16[%c0_43, %c33_44] : memref<8x290xbf16, #tpu.memory_space<vmem>>, vector<4x256xbf16>
    %70 = tpu.concatenate %67, %68, %69 in 0 : vector<4x256xbf16>, vector<4x256xbf16>, vector<4x256xbf16> -> vector<12x256xbf16>
    %c1_45 = arith.constant 1 : index
    %c0_46 = arith.constant 0 : index
    %c0_47 = arith.constant 0 : index
    %71 = vector.load %arg4[%c1_45, %c0_46, %c0_47] : memref<3x8x12xbf16, #tpu.memory_space<vmem>>, vector<1x8x12xbf16>
    %72 = vector.shape_cast %71 : vector<1x8x12xbf16> to vector<8x12xbf16>
    %cst_48 = arith.constant dense<0.000000e+00> : vector<8x256xf32>
    %73 = tpu.matmul %72, %70, %cst_48 {dimension_numbers = #tpu.dot_dimension_numbers<[1], [0], [0], [1], [0, 0, 1, 1], [], []>} : vector<8x12xbf16>, vector<12x256xbf16>, vector<8x256xf32> -> vector<8x256xf32>
    %c0_49 = arith.constant 0 : index
    %c0_50 = arith.constant 0 : index
    %74 = vector.load %arg16[%c0_49, %c0_50] : memref<8x290xbf16, #tpu.memory_space<vmem>>, vector<4x256xbf16>
    %c0_51 = arith.constant 0 : index
    %c16_52 = arith.constant 16 : index
    %75 = vector.load %arg16[%c0_51, %c16_52] : memref<8x290xbf16, #tpu.memory_space<vmem>>, vector<4x256xbf16>
    %c0_53 = arith.constant 0 : index
    %c32_54 = arith.constant 32 : index
    %76 = vector.load %arg16[%c0_53, %c32_54] : memref<8x290xbf16, #tpu.memory_space<vmem>>, vector<4x256xbf16>
    %77 = tpu.concatenate %74, %75, %76 in 0 : vector<4x256xbf16>, vector<4x256xbf16>, vector<4x256xbf16> -> vector<12x256xbf16>
    %c0_55 = arith.constant 0 : index
    %c0_56 = arith.constant 0 : index
    %c0_57 = arith.constant 0 : index
    %78 = vector.load %arg4[%c0_55, %c0_56, %c0_57] : memref<3x8x12xbf16, #tpu.memory_space<vmem>>, vector<1x8x12xbf16>
    %79 = vector.shape_cast %78 : vector<1x8x12xbf16> to vector<8x12xbf16>
    %cst_58 = arith.constant dense<0.000000e+00> : vector<8x256xf32>
    %80 = tpu.matmul %79, %77, %cst_58 {dimension_numbers = #tpu.dot_dimension_numbers<[1], [0], [0], [1], [0, 0, 1, 1], [], []>} : vector<8x12xbf16>, vector<12x256xbf16>, vector<8x256xf32> -> vector<8x256xf32>
    %81 = vector.broadcast %24 : vector<1x256xf32> to vector<8x256xf32>
    %82 = arith.mulf %80, %81 : vector<8x256xf32>
    %83 = arith.addf %73, %82 : vector<8x256xf32>
    %c0_59 = arith.constant 0 : index
    %c2_60 = arith.constant 2 : index
    %84 = vector.load %arg16[%c0_59, %c2_60] : memref<8x290xbf16, #tpu.memory_space<vmem>>, vector<4x256xbf16>
    %c0_61 = arith.constant 0 : index
    %c18_62 = arith.constant 18 : index
    %85 = vector.load %arg16[%c0_61, %c18_62] : memref<8x290xbf16, #tpu.memory_space<vmem>>, vector<4x256xbf16>
    %c0_63 = arith.constant 0 : index
    %c34_64 = arith.constant 34 : index
    %86 = vector.load %arg16[%c0_63, %c34_64] : memref<8x290xbf16, #tpu.memory_space<vmem>>, vector<4x256xbf16>
    %87 = tpu.concatenate %84, %85, %86 in 0 : vector<4x256xbf16>, vector<4x256xbf16>, vector<4x256xbf16> -> vector<12x256xbf16>
    %c2_65 = arith.constant 2 : index
    %c0_66 = arith.constant 0 : index
    %c0_67 = arith.constant 0 : index
    %88 = vector.load %arg4[%c2_65, %c0_66, %c0_67] : memref<3x8x12xbf16, #tpu.memory_space<vmem>>, vector<1x8x12xbf16>
    %89 = vector.shape_cast %88 : vector<1x8x12xbf16> to vector<8x12xbf16>
    %cst_68 = arith.constant dense<0.000000e+00> : vector<8x256xf32>
    %90 = tpu.matmul %89, %87, %cst_68 {dimension_numbers = #tpu.dot_dimension_numbers<[1], [0], [0], [1], [0, 0, 1, 1], [], []>} : vector<8x12xbf16>, vector<12x256xbf16>, vector<8x256xf32> -> vector<8x256xf32>
    %91 = vector.broadcast %28 : vector<1x256xf32> to vector<8x256xf32>
    %92 = arith.mulf %90, %91 : vector<8x256xf32>
    %93 = arith.addf %83, %92 : vector<8x256xf32>
    %c0_69 = arith.constant 0 : index
    %c0_70 = arith.constant 0 : index
    %94 = vector.load %arg5[%c0_69, %c0_70] : memref<8x1xf32, #tpu.memory_space<vmem>>, vector<8x1xf32>
    %95 = vector.broadcast %94 : vector<8x1xf32> to vector<8x256xf32>
    %96 = arith.addf %93, %95 : vector<8x256xf32>
    %cst_71 = arith.constant 0.00999999977 : f32
    %97 = vector.broadcast %cst_71 : f32 to vector<8x256xf32>
    %98 = arith.mulf %97, %96 : vector<8x256xf32>
    %99 = arith.maximumf %96, %98 : vector<8x256xf32>
    %100 = arith.truncf %99 : vector<8x256xf32> to vector<8x256xbf16>
    %c0_72 = arith.constant 0 : index
    %c17_73 = arith.constant 17 : index
    %101 = vector.load %arg16[%c0_72, %c17_73] : memref<8x290xbf16, #tpu.memory_space<vmem>>, vector<8x256xbf16>
    tpu.vector_store %arg16[%c0_72, %c17_73], %100 {strides = array<i32>} : memref<8x290xbf16, #tpu.memory_space<vmem>>, vector<8x256xbf16>,
    %c0_74 = arith.constant 0 : index
    %c1_75 = arith.constant 1 : index
    %102 = vector.load %arg16[%c0_74, %c1_75] : memref<8x290xbf16, #tpu.memory_space<vmem>>, vector<8x256xbf16>
    %c0_76 = arith.constant 0 : index
    %c17_77 = arith.constant 17 : index
    %103 = vector.load %arg16[%c0_76, %c17_77] : memref<8x290xbf16, #tpu.memory_space<vmem>>, vector<8x256xbf16>
    %c0_78 = arith.constant 0 : index
    %c33_79 = arith.constant 33 : index
    %104 = vector.load %arg16[%c0_78, %c33_79] : memref<8x290xbf16, #tpu.memory_space<vmem>>, vector<8x256xbf16>
    %105 = tpu.concatenate %102, %103, %104 in 0 : vector<8x256xbf16>, vector<8x256xbf16>, vector<8x256xbf16> -> vector<24x256xbf16>
    %c1_80 = arith.constant 1 : index
    %c0_81 = arith.constant 0 : index
    %c0_82 = arith.constant 0 : index
    %106 = vector.load %arg6[%c1_80, %c0_81, %c0_82] : memref<3x8x24xbf16, #tpu.memory_space<vmem>>, vector<1x8x24xbf16>
    %107 = vector.shape_cast %106 : vector<1x8x24xbf16> to vector<8x24xbf16>
    %cst_83 = arith.constant dense<0.000000e+00> : vector<8x256xf32>
    %108 = tpu.matmul %107, %105, %cst_83 {dimension_numbers = #tpu.dot_dimension_numbers<[1], [0], [0], [1], [0, 0, 1, 1], [], []>} : vector<8x24xbf16>, vector<24x256xbf16>, vector<8x256xf32> -> vector<8x256xf32>
    %c0_84 = arith.constant 0 : index
    %c0_85 = arith.constant 0 : index
    %109 = vector.load %arg16[%c0_84, %c0_85] : memref<8x290xbf16, #tpu.memory_space<vmem>>, vector<8x256xbf16>
    %c0_86 = arith.constant 0 : index
    %c16_87 = arith.constant 16 : index
    %110 = vector.load %arg16[%c0_86, %c16_87] : memref<8x290xbf16, #tpu.memory_space<vmem>>, vector<8x256xbf16>
    %c0_88 = arith.constant 0 : index
    %c32_89 = arith.constant 32 : index
    %111 = vector.load %arg16[%c0_88, %c32_89] : memref<8x290xbf16, #tpu.memory_space<vmem>>, vector<8x256xbf16>
    %112 = tpu.concatenate %109, %110, %111 in 0 : vector<8x256xbf16>, vector<8x256xbf16>, vector<8x256xbf16> -> vector<24x256xbf16>
    %c0_90 = arith.constant 0 : index
    %c0_91 = arith.constant 0 : index
    %c0_92 = arith.constant 0 : index
    %113 = vector.load %arg6[%c0_90, %c0_91, %c0_92] : memref<3x8x24xbf16, #tpu.memory_space<vmem>>, vector<1x8x24xbf16>
    %114 = vector.shape_cast %113 : vector<1x8x24xbf16> to vector<8x24xbf16>
    %cst_93 = arith.constant dense<0.000000e+00> : vector<8x256xf32>
    %115 = tpu.matmul %114, %112, %cst_93 {dimension_numbers = #tpu.dot_dimension_numbers<[1], [0], [0], [1], [0, 0, 1, 1], [], []>} : vector<8x24xbf16>, vector<24x256xbf16>, vector<8x256xf32> -> vector<8x256xf32>
    %116 = vector.broadcast %24 : vector<1x256xf32> to vector<8x256xf32>
    %117 = arith.mulf %115, %116 : vector<8x256xf32>
    %118 = arith.addf %108, %117 : vector<8x256xf32>
    %c0_94 = arith.constant 0 : index
    %c2_95 = arith.constant 2 : index
    %119 = vector.load %arg16[%c0_94, %c2_95] : memref<8x290xbf16, #tpu.memory_space<vmem>>, vector<8x256xbf16>
    %c0_96 = arith.constant 0 : index
    %c18_97 = arith.constant 18 : index
    %120 = vector.load %arg16[%c0_96, %c18_97] : memref<8x290xbf16, #tpu.memory_space<vmem>>, vector<8x256xbf16>
    %c0_98 = arith.constant 0 : index
    %c34_99 = arith.constant 34 : index
    %121 = vector.load %arg16[%c0_98, %c34_99] : memref<8x290xbf16, #tpu.memory_space<vmem>>, vector<8x256xbf16>
    %122 = tpu.concatenate %119, %120, %121 in 0 : vector<8x256xbf16>, vector<8x256xbf16>, vector<8x256xbf16> -> vector<24x256xbf16>
    %c2_100 = arith.constant 2 : index
    %c0_101 = arith.constant 0 : index
    %c0_102 = arith.constant 0 : index
    %123 = vector.load %arg6[%c2_100, %c0_101, %c0_102] : memref<3x8x24xbf16, #tpu.memory_space<vmem>>, vector<1x8x24xbf16>
    %124 = vector.shape_cast %123 : vector<1x8x24xbf16> to vector<8x24xbf16>
    %cst_103 = arith.constant dense<0.000000e+00> : vector<8x256xf32>
    %125 = tpu.matmul %124, %122, %cst_103 {dimension_numbers = #tpu.dot_dimension_numbers<[1], [0], [0], [1], [0, 0, 1, 1], [], []>} : vector<8x24xbf16>, vector<24x256xbf16>, vector<8x256xf32> -> vector<8x256xf32>
    %126 = vector.broadcast %28 : vector<1x256xf32> to vector<8x256xf32>
    %127 = arith.mulf %125, %126 : vector<8x256xf32>
    %128 = arith.addf %118, %127 : vector<8x256xf32>
    %c0_104 = arith.constant 0 : index
    %c0_105 = arith.constant 0 : index
    %129 = vector.load %arg7[%c0_104, %c0_105] : memref<8x1xf32, #tpu.memory_space<vmem>>, vector<8x1xf32>
    %130 = vector.broadcast %129 : vector<8x1xf32> to vector<8x256xf32>
    %131 = arith.addf %128, %130 : vector<8x256xf32>
    %cst_106 = arith.constant 0.00999999977 : f32
    %132 = vector.broadcast %cst_106 : f32 to vector<8x256xf32>
    %133 = arith.mulf %132, %131 : vector<8x256xf32>
    %134 = arith.maximumf %131, %133 : vector<8x256xf32>
    %135 = vector.extract_strided_slice %134 {offsets = [0, 0], sizes = [1, 256], strides = [1, 1]} : vector<8x256xf32> to vector<1x256xf32>
    %c0_107 = arith.constant 0 : index
    %c0_108 = arith.constant 0 : index
    %c0_109 = arith.constant 0 : index
    %136 = vector.load %arg8[%c0_107, %c0_108, %c0_109] : memref<1x1x256xf32, #tpu.memory_space<vmem>>, vector<1x1x256xf32>
    %137 = vector.shape_cast %136 : vector<1x1x256xf32> to vector<1x256xf32>
    %138 = vector.shape_cast %135 : vector<1x256xf32> to vector<1x1x256xf32>
    tpu.vector_store %arg8[%c0_107, %c0_108, %c0_109], %138 {strides = array<i32>} : memref<1x1x256xf32, #tpu.memory_space<vmem>>, vector<1x1x256xf32>,
    %139 = vector.extract_strided_slice %134 {offsets = [1, 0], sizes = [1, 256], strides = [1, 1]} : vector<8x256xf32> to vector<1x256xf32>
    %c0_110 = arith.constant 0 : index
    %c0_111 = arith.constant 0 : index
    %c0_112 = arith.constant 0 : index
    %140 = vector.load %arg9[%c0_110, %c0_111, %c0_112] : memref<1x1x256xf32, #tpu.memory_space<vmem>>, vector<1x1x256xf32>
    %141 = vector.shape_cast %140 : vector<1x1x256xf32> to vector<1x256xf32>
    %142 = vector.shape_cast %139 : vector<1x256xf32> to vector<1x1x256xf32>
    tpu.vector_store %arg9[%c0_110, %c0_111, %c0_112], %142 {strides = array<i32>} : memref<1x1x256xf32, #tpu.memory_space<vmem>>, vector<1x1x256xf32>,
    %143 = vector.extract_strided_slice %134 {offsets = [2, 0], sizes = [1, 256], strides = [1, 1]} : vector<8x256xf32> to vector<1x256xf32>
    %c0_113 = arith.constant 0 : index
    %c0_114 = arith.constant 0 : index
    %c0_115 = arith.constant 0 : index
    %144 = vector.load %arg10[%c0_113, %c0_114, %c0_115] : memref<1x1x256xf32, #tpu.memory_space<vmem>>, vector<1x1x256xf32>
    %145 = vector.shape_cast %144 : vector<1x1x256xf32> to vector<1x256xf32>
    %146 = vector.shape_cast %143 : vector<1x256xf32> to vector<1x1x256xf32>
    tpu.vector_store %arg10[%c0_113, %c0_114, %c0_115], %146 {strides = array<i32>} : memref<1x1x256xf32, #tpu.memory_space<vmem>>, vector<1x1x256xf32>,
    %147 = vector.extract_strided_slice %134 {offsets = [3, 0], sizes = [1, 256], strides = [1, 1]} : vector<8x256xf32> to vector<1x256xf32>
    %c0_116 = arith.constant 0 : index
    %c0_117 = arith.constant 0 : index
    %c0_118 = arith.constant 0 : index
    %148 = vector.load %arg11[%c0_116, %c0_117, %c0_118] : memref<1x1x256xf32, #tpu.memory_space<vmem>>, vector<1x1x256xf32>
    %149 = vector.shape_cast %148 : vector<1x1x256xf32> to vector<1x256xf32>
    %150 = vector.shape_cast %147 : vector<1x256xf32> to vector<1x1x256xf32>
    tpu.vector_store %arg11[%c0_116, %c0_117, %c0_118], %150 {strides = array<i32>} : memref<1x1x256xf32, #tpu.memory_space<vmem>>, vector<1x1x256xf32>,
    %151 = vector.extract_strided_slice %134 {offsets = [4, 0], sizes = [1, 256], strides = [1, 1]} : vector<8x256xf32> to vector<1x256xf32>
    %c0_119 = arith.constant 0 : index
    %c0_120 = arith.constant 0 : index
    %c0_121 = arith.constant 0 : index
    %152 = vector.load %arg12[%c0_119, %c0_120, %c0_121] : memref<1x1x256xf32, #tpu.memory_space<vmem>>, vector<1x1x256xf32>
    %153 = vector.shape_cast %152 : vector<1x1x256xf32> to vector<1x256xf32>
    %154 = vector.shape_cast %151 : vector<1x256xf32> to vector<1x1x256xf32>
    tpu.vector_store %arg12[%c0_119, %c0_120, %c0_121], %154 {strides = array<i32>} : memref<1x1x256xf32, #tpu.memory_space<vmem>>, vector<1x1x256xf32>,
    %155 = vector.extract_strided_slice %134 {offsets = [5, 0], sizes = [1, 256], strides = [1, 1]} : vector<8x256xf32> to vector<1x256xf32>
    %c0_122 = arith.constant 0 : index
    %c0_123 = arith.constant 0 : index
    %c0_124 = arith.constant 0 : index
    %156 = vector.load %arg13[%c0_122, %c0_123, %c0_124] : memref<1x1x256xf32, #tpu.memory_space<vmem>>, vector<1x1x256xf32>
    %157 = vector.shape_cast %156 : vector<1x1x256xf32> to vector<1x256xf32>
    %158 = vector.shape_cast %155 : vector<1x256xf32> to vector<1x1x256xf32>
    tpu.vector_store %arg13[%c0_122, %c0_123, %c0_124], %158 {strides = array<i32>} : memref<1x1x256xf32, #tpu.memory_space<vmem>>, vector<1x1x256xf32>,
    %159 = vector.extract_strided_slice %134 {offsets = [6, 0], sizes = [1, 256], strides = [1, 1]} : vector<8x256xf32> to vector<1x256xf32>
    %c0_125 = arith.constant 0 : index
    %c0_126 = arith.constant 0 : index
    %c0_127 = arith.constant 0 : index
    %160 = vector.load %arg14[%c0_125, %c0_126, %c0_127] : memref<1x1x256xf32, #tpu.memory_space<vmem>>, vector<1x1x256xf32>
    %161 = vector.shape_cast %160 : vector<1x1x256xf32> to vector<1x256xf32>
    %162 = vector.shape_cast %159 : vector<1x256xf32> to vector<1x1x256xf32>
    tpu.vector_store %arg14[%c0_125, %c0_126, %c0_127], %162 {strides = array<i32>} : memref<1x1x256xf32, #tpu.memory_space<vmem>>, vector<1x1x256xf32>,
    %163 = vector.extract_strided_slice %134 {offsets = [7, 0], sizes = [1, 256], strides = [1, 1]} : vector<8x256xf32> to vector<1x256xf32>
    %c0_128 = arith.constant 0 : index
    %c0_129 = arith.constant 0 : index
    %c0_130 = arith.constant 0 : index
    %164 = vector.load %arg15[%c0_128, %c0_129, %c0_130] : memref<1x1x256xf32, #tpu.memory_space<vmem>>, vector<1x1x256xf32>
    %165 = vector.shape_cast %164 : vector<1x1x256xf32> to vector<1x256xf32>
    %166 = vector.shape_cast %163 : vector<1x256xf32> to vector<1x1x256xf32>
    tpu.vector_store %arg15[%c0_128, %c0_129, %c0_130], %166 {strides = array<i32>} : memref<1x1x256xf32, #tpu.memory_space<vmem>>, vector<1x1x256xf32>,
    return
  }
  func.func @transform_0(%arg0: i32) -> (i32, i32, i32) {
    %c0_i32 = arith.constant 0 : i32
    %c0_i32_0 = arith.constant 0 : i32
    %c0_i32_1 = arith.constant 0 : i32
    return %arg0, %c0_i32, %c0_i32_0 : i32, i32, i32
  }
  func.func @transform_1(%arg0: i32) -> (i32, i32, i32) {
    %c0_i32 = arith.constant 0 : i32
    %c0_i32_0 = arith.constant 0 : i32
    %c0_i32_1 = arith.constant 0 : i32
    %c0_i32_2 = arith.constant 0 : i32
    return %c0_i32, %c0_i32_0, %c0_i32_1 : i32, i32, i32
  }
  func.func @transform_2(%arg0: i32) -> (i32, i32) {
    %c0_i32 = arith.constant 0 : i32
    %c0_i32_0 = arith.constant 0 : i32
    %c0_i32_1 = arith.constant 0 : i32
    return %c0_i32, %c0_i32_0 : i32, i32
  }
  func.func @transform_3(%arg0: i32) -> (i32, i32, i32) {
    %c0_i32 = arith.constant 0 : i32
    %c0_i32_0 = arith.constant 0 : i32
    %c0_i32_1 = arith.constant 0 : i32
    %c0_i32_2 = arith.constant 0 : i32
    return %c0_i32, %c0_i32_0, %c0_i32_1 : i32, i32, i32
  }
  func.func @transform_4(%arg0: i32) -> (i32, i32) {
    %c0_i32 = arith.constant 0 : i32
    %c0_i32_0 = arith.constant 0 : i32
    %c0_i32_1 = arith.constant 0 : i32
    return %c0_i32, %c0_i32_0 : i32, i32
  }
  func.func @transform_5(%arg0: i32) -> (i32, i32, i32) {
    %c0_i32 = arith.constant 0 : i32
    %c0_i32_0 = arith.constant 0 : i32
    %c0_i32_1 = arith.constant 0 : i32
    %c0_i32_2 = arith.constant 0 : i32
    return %c0_i32, %c0_i32_0, %c0_i32_1 : i32, i32, i32
  }
  func.func @transform_6(%arg0: i32) -> (i32, i32) {
    %c0_i32 = arith.constant 0 : i32
    %c0_i32_0 = arith.constant 0 : i32
    %c0_i32_1 = arith.constant 0 : i32
    return %c0_i32, %c0_i32_0 : i32, i32
  }
  func.func @transform_7(%arg0: i32) -> (i32, i32, i32) {
    %c0_i32 = arith.constant 0 : i32
    %c0_i32_0 = arith.constant 0 : i32
    %c0_i32_1 = arith.constant 0 : i32
    return %arg0, %c0_i32, %c0_i32_0 : i32, i32, i32
  }
  func.func @transform_8(%arg0: i32) -> (i32, i32, i32) {
    %c0_i32 = arith.constant 0 : i32
    %c0_i32_0 = arith.constant 0 : i32
    %c0_i32_1 = arith.constant 0 : i32
    return %arg0, %c0_i32, %c0_i32_0 : i32, i32, i32
  }
  func.func @transform_9(%arg0: i32) -> (i32, i32, i32) {
    %c0_i32 = arith.constant 0 : i32
    %c0_i32_0 = arith.constant 0 : i32
    %c0_i32_1 = arith.constant 0 : i32
    return %arg0, %c0_i32, %c0_i32_0 : i32, i32, i32
  }
  func.func @transform_10(%arg0: i32) -> (i32, i32, i32) {
    %c0_i32 = arith.constant 0 : i32
    %c0_i32_0 = arith.constant 0 : i32
    %c0_i32_1 = arith.constant 0 : i32
    return %arg0, %c0_i32, %c0_i32_0 : i32, i32, i32
  }
  func.func @transform_11(%arg0: i32) -> (i32, i32, i32) {
    %c0_i32 = arith.constant 0 : i32
    %c0_i32_0 = arith.constant 0 : i32
    %c0_i32_1 = arith.constant 0 : i32
    return %arg0, %c0_i32, %c0_i32_0 : i32, i32, i32
  }
  func.func @transform_12(%arg0: i32) -> (i32, i32, i32) {
    %c0_i32 = arith.constant 0 : i32
    %c0_i32_0 = arith.constant 0 : i32
    %c0_i32_1 = arith.constant 0 : i32
    return %arg0, %c0_i32, %c0_i32_0 : i32, i32, i32
  }
  func.func @transform_13(%arg0: i32) -> (i32, i32, i32) {
    %c0_i32 = arith.constant 0 : i32
    %c0_i32_0 = arith.constant 0 : i32
    %c0_i32_1 = arith.constant 0 : i32
    return %arg0, %c0_i32, %c0_i32_0 : i32, i32, i32
  }
  func.func @transform_14(%arg0: i32) -> (i32, i32, i32) {
    %c0_i32 = arith.constant 0 : i32
    %c0_i32_0 = arith.constant 0 : i32
    %c0_i32_1 = arith.constant 0 : i32
    return %arg0, %c0_i32, %c0_i32_0 : i32, i32, i32
  }
}

</mosaic_0001>

<llo_original>
// kernel: low_enhance_net.1
$region0: #{low_enhance_net.1}
  #allocation0 [shape = 'u32[]', space=smem, size = 0x4, offset = 0x4, fixed_abs, tag = 'smem constant byte address 0x4 - core index']
  #allocation1 [shape = 'u32[144,128]{1,0:T(1,128)}', space=vmem, size = 0x12000, scoped, tag = 'internal scratch']
  #allocation2 [shape = 'bf16[8,290]{1,0:T(8,128)(2,1)}', space=vmem, size = 0x1800, scoped, tag = 'scratch operand']
  %s0 = inlined_call_operand.vmem [shape: bf16[2,4,256], index: 0, kind: input, shape index: {}]
  %s1 = inlined_call_operand.vmem [shape: bf16[3,4,12], index: 1, kind: input, shape index: {}]
  %s2 = inlined_call_operand.vmem [shape: f32[4,1], index: 2, kind: input, shape index: {}]
  %s3 = inlined_call_operand.vmem [shape: bf16[3,8,12], index: 3, kind: input, shape index: {}]
  %s4 = inlined_call_operand.vmem [shape: f32[8,1], index: 4, kind: input, shape index: {}]
  %s5 = inlined_call_operand.vmem [shape: bf16[3,8,24], index: 5, kind: input, shape index: {}]
  %s6 = inlined_call_operand.vmem [shape: f32[8,1], index: 6, kind: input, shape index: {}]
  %s7 = inlined_call_operand.vmem [shape: f32[2,1,256], index: 7, kind: output, shape index: {0}]
  %s8 = inlined_call_operand.vmem [shape: f32[2,1,256], index: 8, kind: output, shape index: {1}]
  %s9 = inlined_call_operand.vmem [shape: f32[2,1,256], index: 9, kind: output, shape index: {2}]
  %s10 = inlined_call_operand.vmem [shape: f32[2,1,256], index: 10, kind: output, shape index: {3}]
  %s11 = inlined_call_operand.vmem [shape: f32[2,1,256], index: 11, kind: output, shape index: {4}]
  %s12 = inlined_call_operand.vmem [shape: f32[2,1,256], index: 12, kind: output, shape index: {5}]
  %s13 = inlined_call_operand.vmem [shape: f32[2,1,256], index: 13, kind: output, shape index: {6}]
  %s14 = inlined_call_operand.vmem [shape: f32[2,1,256], index: 14, kind: output, shape index: {7}]
  %15 = xla_tuple %s7, %s8, %s9, %s10, %s11, %s12, %s13, %s14
  %s16 = sld [smem:[#allocation0]]
  $region117: #{low_enhance_net.1} parent=0
    _
  %s18 = ssub.s32 1, %s16
  %s19 = scalar_select 0, %s18, %s16
  loop: start=0, step=1, limit=4
  $region2: #{low_enhance_net.1} parent=0 // loop_pre_header
    _
  $region3: #{low_enhance_net.1} parent=0 // loop_header
    %s21 = sphi 0, %s25
    %p22 = scmp.ge.s32.totalorder %s21, 4
    %s31 = sphi 0, %s33
    %s34 = sphi 0, %s31
    %s35 = sphi 0, %s34
    %s51 = sphi 0, %s35
    %s55 = sphi 0, %s55
    %s57 = sphi 0, %s55
    %s58 = sphi 0, %s57
    %s72 = sphi 0, %s58
    %s76 = sphi 0, %s76
    %s78 = sphi 0, %s76
    %s79 = sphi 0, %s78
    %s93 = sphi 0, %s79
    %s97 = sphi 0, %s97
    %s99 = sphi 0, %s97
    %s100 = sphi 0, %s99
    %s114 = sphi 0, %s100
    %s118 = sphi 0, %s118
    %s120 = sphi 0, %s118
    %s121 = sphi 0, %s120
    %s135 = sphi 0, %s121
    %s139 = sphi 0, %s139
    %s141 = sphi 0, %s139
    %s142 = sphi 0, %s141
    %s156 = sphi 0, %s142
    %s160 = sphi 0, %s160
    %s162 = sphi 0, %s160
    %s163 = sphi 0, %s162
    %s177 = sphi 0, %s163
    %s183 = sphi 0, %s185
    %s186 = sphi 0, %s183
    %s187 = sphi 0, %s186
    %s203 = sphi 0, %s187
    %s209 = sphi 0, %s211
    %s212 = sphi 0, %s209
    %s213 = sphi 0, %s212
    %s229 = sphi 0, %s213
    %s235 = sphi 0, %s237
    %s238 = sphi 0, %s235
    %s239 = sphi 0, %s238
    %s255 = sphi 0, %s239
    %s261 = sphi 0, %s263
    %s264 = sphi 0, %s261
    %s265 = sphi 0, %s264
    %s281 = sphi 0, %s265
    %s287 = sphi 0, %s289
    %s290 = sphi 0, %s287
    %s291 = sphi 0, %s290
    %s307 = sphi 0, %s291
    %s313 = sphi 0, %s315
    %s316 = sphi 0, %s313
    %s317 = sphi 0, %s316
    %s333 = sphi 0, %s317
    %s339 = sphi 0, %s341
    %s342 = sphi 0, %s339
    %s343 = sphi 0, %s342
    %s359 = sphi 0, %s343
    %s365 = sphi 0, %s367
    %s368 = sphi 0, %s365
    %s369 = sphi 0, %s368
    %s385 = sphi 0, %s369
  $region4: #{low_enhance_net.1} parent=0 // loop_header_branch
    %24 = sbr.rel (%p22) target = $region8
  $region5: #{low_enhance_net.1} parent=0 // loop_body
    %s26 = ssub.s32 %s21, 1
    %s27 = ssub.s32 %s21, 2
    %s28 = sadd.s32 %s21, 1
    %s29 = ssub.s32 %s21, %s28
    %p30 = scmp.eq.s32.totalorder %s29, 0
    %s32 = sadd.s32 %s31, 1
    %s33 = scalar_select %p30, %s31, %s32
    %p36 = pneg %p30
    %p37 = scmp.eq.s32.totalorder %s21, 1
    %p38 = por %p36, %p37
    %p39 = scmp.ne.s32.totalorder %s31, %s34
    %p40 = scmp.eq.s32.totalorder %s21, 0
    %p41 = por %p39, %p40
    %p42 = scmp.ne.s32.totalorder %s31, %s34
    %p43 = scmp.eq.s32.totalorder %s26, 1
    %p44 = por %p42, %p43
    %p45 = scmp.ne.s32.totalorder %s34, %s35
    %p46 = scmp.eq.s32.totalorder %s26, 0
    %p47 = por %p45, %p46
    %p48 = scmp.ne.s32.totalorder %s34, %s35
    %p49 = scmp.eq.s32.totalorder %s27, 1
    %p50 = por %p48, %p49
    %p52 = scmp.ne.s32.totalorder %s35, %s51
    %p53 = scmp.eq.s32.totalorder %s27, 0
    %p54 = por %p52, %p53
    %s56 = sadd.s32 %s55, 1
    %p59 = scmp.eq.s32.totalorder %s21, 1
    %p60 = scmp.ne.s32.totalorder %s55, %s57
    %p61 = scmp.eq.s32.totalorder %s21, 0
    %p62 = por %p60, %p61
    %p63 = scmp.ne.s32.totalorder %s55, %s57
    %p64 = scmp.eq.s32.totalorder %s26, 1
    %p65 = por %p63, %p64
    %p66 = scmp.ne.s32.totalorder %s57, %s58
    %p67 = scmp.eq.s32.totalorder %s26, 0
    %p68 = por %p66, %p67
    %p69 = scmp.ne.s32.totalorder %s57, %s58
    %p70 = scmp.eq.s32.totalorder %s27, 1
    %p71 = por %p69, %p70
    %p73 = scmp.ne.s32.totalorder %s58, %s72
    %p74 = scmp.eq.s32.totalorder %s27, 0
    %p75 = por %p73, %p74
    %s77 = sadd.s32 %s76, 1
    %p80 = scmp.eq.s32.totalorder %s21, 1
    %p81 = scmp.ne.s32.totalorder %s76, %s78
    %p82 = scmp.eq.s32.totalorder %s21, 0
    %p83 = por %p81, %p82
    %p84 = scmp.ne.s32.totalorder %s76, %s78
    %p85 = scmp.eq.s32.totalorder %s26, 1
    %p86 = por %p84, %p85
    %p87 = scmp.ne.s32.totalorder %s78, %s79
    %p88 = scmp.eq.s32.totalorder %s26, 0
    %p89 = por %p87, %p88
    %p90 = scmp.ne.s32.totalorder %s78, %s79
    %p91 = scmp.eq.s32.totalorder %s27, 1
    %p92 = por %p90, %p91
    %p94 = scmp.ne.s32.totalorder %s79, %s93
    %p95 = scmp.eq.s32.totalorder %s27, 0
    %p96 = por %p94, %p95
    %s98 = sadd.s32 %s97, 1
    %p101 = scmp.eq.s32.totalorder %s21, 1
    %p102 = scmp.ne.s32.totalorder %s97, %s99
    %p103 = scmp.eq.s32.totalorder %s21, 0
    %p104 = por %p102, %p103
    %p105 = scmp.ne.s32.totalorder %s97, %s99
    %p106 = scmp.eq.s32.totalorder %s26, 1
    %p107 = por %p105, %p106
    %p108 = scmp.ne.s32.totalorder %s99, %s100
    %p109 = scmp.eq.s32.totalorder %s26, 0
    %p110 = por %p108, %p109
    %p111 = scmp.ne.s32.totalorder %s99, %s100
    %p112 = scmp.eq.s32.totalorder %s27, 1
    %p113 = por %p111, %p112
    %p115 = scmp.ne.s32.totalorder %s100, %s114
    %p116 = scmp.eq.s32.totalorder %s27, 0
    %p117 = por %p115, %p116
    %s119 = sadd.s32 %s118, 1
    %p122 = scmp.eq.s32.totalorder %s21, 1
    %p123 = scmp.ne.s32.totalorder %s118, %s120
    %p124 = scmp.eq.s32.totalorder %s21, 0
    %p125 = por %p123, %p124
    %p126 = scmp.ne.s32.totalorder %s118, %s120
    %p127 = scmp.eq.s32.totalorder %s26, 1
    %p128 = por %p126, %p127
    %p129 = scmp.ne.s32.totalorder %s120, %s121
    %p130 = scmp.eq.s32.totalorder %s26, 0
    %p131 = por %p129, %p130
    %p132 = scmp.ne.s32.totalorder %s120, %s121
    %p133 = scmp.eq.s32.totalorder %s27, 1
    %p134 = por %p132, %p133
    %p136 = scmp.ne.s32.totalorder %s121, %s135
    %p137 = scmp.eq.s32.totalorder %s27, 0
    %p138 = por %p136, %p137
    %s140 = sadd.s32 %s139, 1
    %p143 = scmp.eq.s32.totalorder %s21, 1
    %p144 = scmp.ne.s32.totalorder %s139, %s141
    %p145 = scmp.eq.s32.totalorder %s21, 0
    %p146 = por %p144, %p145
    %p147 = scmp.ne.s32.totalorder %s139, %s141
    %p148 = scmp.eq.s32.totalorder %s26, 1
    %p149 = por %p147, %p148
    %p150 = scmp.ne.s32.totalorder %s141, %s142
    %p151 = scmp.eq.s32.totalorder %s26, 0
    %p152 = por %p150, %p151
    %p153 = scmp.ne.s32.totalorder %s141, %s142
    %p154 = scmp.eq.s32.totalorder %s27, 1
    %p155 = por %p153, %p154
    %p157 = scmp.ne.s32.totalorder %s142, %s156
    %p158 = scmp.eq.s32.totalorder %s27, 0
    %p159 = por %p157, %p158
    %s161 = sadd.s32 %s160, 1
    %p164 = scmp.eq.s32.totalorder %s21, 1
    %p165 = scmp.ne.s32.totalorder %s160, %s162
    %p166 = scmp.eq.s32.totalorder %s21, 0
    %p167 = por %p165, %p166
    %p168 = scmp.ne.s32.totalorder %s160, %s162
    %p169 = scmp.eq.s32.totalorder %s26, 1
    %p170 = por %p168, %p169
    %p171 = scmp.ne.s32.totalorder %s162, %s163
    %p172 = scmp.eq.s32.totalorder %s26, 0
    %p173 = por %p171, %p172
    %p174 = scmp.ne.s32.totalorder %s162, %s163
    %p175 = scmp.eq.s32.totalorder %s27, 1
    %p176 = por %p174, %p175
    %p178 = scmp.ne.s32.totalorder %s163, %s177
    %p179 = scmp.eq.s32.totalorder %s27, 0
    %p180 = por %p178, %p179
    %s181 = ssub.s32 %s21, %s28
    %p182 = scmp.eq.s32.totalorder %s181, 0
    %s184 = sadd.s32 %s183, 1
    %s185 = scalar_select %p182, %s183, %s184
    %p188 = pneg %p182
    %p189 = scmp.eq.s32.totalorder %s21, 1
    %p190 = por %p188, %p189
    %p191 = scmp.ne.s32.totalorder %s183, %s186
    %p192 = scmp.eq.s32.totalorder %s21, 0
    %p193 = por %p191, %p192
    %p194 = scmp.ne.s32.totalorder %s183, %s186
    %p195 = scmp.eq.s32.totalorder %s26, 1
    %p196 = por %p194, %p195
    %p197 = scmp.ne.s32.totalorder %s186, %s187
    %p198 = scmp.eq.s32.totalorder %s26, 0
    %p199 = por %p197, %p198
    %p200 = scmp.ne.s32.totalorder %s186, %s187
    %p201 = scmp.eq.s32.totalorder %s27, 1
    %p202 = por %p200, %p201
    %p204 = scmp.ne.s32.totalorder %s187, %s203
    %p205 = scmp.eq.s32.totalorder %s27, 0
    %p206 = por %p204, %p205
    %s207 = ssub.s32 %s21, %s28
    %p208 = scmp.eq.s32.totalorder %s207, 0
    %s210 = sadd.s32 %s209, 1
    %s211 = scalar_select %p208, %s209, %s210
    %p214 = pneg %p208
    %p215 = scmp.eq.s32.totalorder %s21, 1
    %p216 = por %p214, %p215
    %p217 = scmp.ne.s32.totalorder %s209, %s212
    %p218 = scmp.eq.s32.totalorder %s21, 0
    %p219 = por %p217, %p218
    %p220 = scmp.ne.s32.totalorder %s209, %s212
    %p221 = scmp.eq.s32.totalorder %s26, 1
    %p222 = por %p220, %p221
    %p223 = scmp.ne.s32.totalorder %s212, %s213
    %p224 = scmp.eq.s32.totalorder %s26, 0
    %p225 = por %p223, %p224
    %p226 = scmp.ne.s32.totalorder %s212, %s213
    %p227 = scmp.eq.s32.totalorder %s27, 1
    %p228 = por %p226, %p227
    %p230 = scmp.ne.s32.totalorder %s213, %s229
    %p231 = scmp.eq.s32.totalorder %s27, 0
    %p232 = por %p230, %p231
    %s233 = ssub.s32 %s21, %s28
    %p234 = scmp.eq.s32.totalorder %s233, 0
    %s236 = sadd.s32 %s235, 1
    %s237 = scalar_select %p234, %s235, %s236
    %p240 = pneg %p234
    %p241 = scmp.eq.s32.totalorder %s21, 1
    %p242 = por %p240, %p241
    %p243 = scmp.ne.s32.totalorder %s235, %s238
    %p244 = scmp.eq.s32.totalorder %s21, 0
    %p245 = por %p243, %p244
    %p246 = scmp.ne.s32.totalorder %s235, %s238
    %p247 = scmp.eq.s32.totalorder %s26, 1
    %p248 = por %p246, %p247
    %p249 = scmp.ne.s32.totalorder %s238, %s239
    %p250 = scmp.eq.s32.totalorder %s26, 0
    %p251 = por %p249, %p250
    %p252 = scmp.ne.s32.totalorder %s238, %s239
    %p253 = scmp.eq.s32.totalorder %s27, 1
    %p254 = por %p252, %p253
    %p256 = scmp.ne.s32.totalorder %s239, %s255
    %p257 = scmp.eq.s32.totalorder %s27, 0
    %p258 = por %p256, %p257
    %s259 = ssub.s32 %s21, %s28
    %p260 = scmp.eq.s32.totalorder %s259, 0
    %s262 = sadd.s32 %s261, 1
    %s263 = scalar_select %p260, %s261, %s262
    %p266 = pneg %p260
    %p267 = scmp.eq.s32.totalorder %s21, 1
    %p268 = por %p266, %p267
    %p269 = scmp.ne.s32.totalorder %s261, %s264
    %p270 = scmp.eq.s32.totalorder %s21, 0
    %p271 = por %p269, %p270
    %p272 = scmp.ne.s32.totalorder %s261, %s264
    %p273 = scmp.eq.s32.totalorder %s26, 1
    %p274 = por %p272, %p273
    %p275 = scmp.ne.s32.totalorder %s264, %s265
    %p276 = scmp.eq.s32.totalorder %s26, 0
    %p277 = por %p275, %p276
    %p278 = scmp.ne.s32.totalorder %s264, %s265
    %p279 = scmp.eq.s32.totalorder %s27, 1
    %p280 = por %p278, %p279
    %p282 = scmp.ne.s32.totalorder %s265, %s281
    %p283 = scmp.eq.s32.totalorder %s27, 0
    %p284 = por %p282, %p283
    %s285 = ssub.s32 %s21, %s28
    %p286 = scmp.eq.s32.totalorder %s285, 0
    %s288 = sadd.s32 %s287, 1
    %s289 = scalar_select %p286, %s287, %s288
    %p292 = pneg %p286
    %p293 = scmp.eq.s32.totalorder %s21, 1
    %p294 = por %p292, %p293
    %p295 = scmp.ne.s32.totalorder %s287, %s290
    %p296 = scmp.eq.s32.totalorder %s21, 0
    %p297 = por %p295, %p296
    %p298 = scmp.ne.s32.totalorder %s287, %s290
    %p299 = scmp.eq.s32.totalorder %s26, 1
    %p300 = por %p298, %p299
    %p301 = scmp.ne.s32.totalorder %s290, %s291
    %p302 = scmp.eq.s32.totalorder %s26, 0
    %p303 = por %p301, %p302
    %p304 = scmp.ne.s32.totalorder %s290, %s291
    %p305 = scmp.eq.s32.totalorder %s27, 1
    %p306 = por %p304, %p305
    %p308 = scmp.ne.s32.totalorder %s291, %s307
    %p309 = scmp.eq.s32.totalorder %s27, 0
    %p310 = por %p308, %p309
    %s311 = ssub.s32 %s21, %s28
    %p312 = scmp.eq.s32.totalorder %s311, 0
    %s314 = sadd.s32 %s313, 1
    %s315 = scalar_select %p312, %s313, %s314
    %p318 = pneg %p312
    %p319 = scmp.eq.s32.totalorder %s21, 1
    %p320 = por %p318, %p319
    %p321 = scmp.ne.s32.totalorder %s313, %s316
    %p322 = scmp.eq.s32.totalorder %s21, 0
    %p323 = por %p321, %p322
    %p324 = scmp.ne.s32.totalorder %s313, %s316
    %p325 = scmp.eq.s32.totalorder %s26, 1
    %p326 = por %p324, %p325
    %p327 = scmp.ne.s32.totalorder %s316, %s317
    %p328 = scmp.eq.s32.totalorder %s26, 0
    %p329 = por %p327, %p328
    %p330 = scmp.ne.s32.totalorder %s316, %s317
    %p331 = scmp.eq.s32.totalorder %s27, 1
    %p332 = por %p330, %p331
    %p334 = scmp.ne.s32.totalorder %s317, %s333
    %p335 = scmp.eq.s32.totalorder %s27, 0
    %p336 = por %p334, %p335
    %s337 = ssub.s32 %s21, %s28
    %p338 = scmp.eq.s32.totalorder %s337, 0
    %s340 = sadd.s32 %s339, 1
    %s341 = scalar_select %p338, %s339, %s340
    %p344 = pneg %p338
    %p345 = scmp.eq.s32.totalorder %s21, 1
    %p346 = por %p344, %p345
    %p347 = scmp.ne.s32.totalorder %s339, %s342
    %p348 = scmp.eq.s32.totalorder %s21, 0
    %p349 = por %p347, %p348
    %p350 = scmp.ne.s32.totalorder %s339, %s342
    %p351 = scmp.eq.s32.totalorder %s26, 1
    %p352 = por %p350, %p351
    %p353 = scmp.ne.s32.totalorder %s342, %s343
    %p354 = scmp.eq.s32.totalorder %s26, 0
    %p355 = por %p353, %p354
    %p356 = scmp.ne.s32.totalorder %s342, %s343
    %p357 = scmp.eq.s32.totalorder %s27, 1
    %p358 = por %p356, %p357
    %p360 = scmp.ne.s32.totalorder %s343, %s359
    %p361 = scmp.eq.s32.totalorder %s27, 0
    %p362 = por %p360, %p361
    %s363 = ssub.s32 %s21, %s28
    %p364 = scmp.eq.s32.totalorder %s363, 0
    %s366 = sadd.s32 %s365, 1
    %s367 = scalar_select %p364, %s365, %s366
    %p370 = pneg %p364
    %p371 = scmp.eq.s32.totalorder %s21, 1
    %p372 = por %p370, %p371
    %p373 = scmp.ne.s32.totalorder %s365, %s368
    %p374 = scmp.eq.s32.totalorder %s21, 0
    %p375 = por %p373, %p374
    %p376 = scmp.ne.s32.totalorder %s365, %s368
    %p377 = scmp.eq.s32.totalorder %s26, 1
    %p378 = por %p376, %p377
    %p379 = scmp.ne.s32.totalorder %s368, %s369
    %p380 = scmp.eq.s32.totalorder %s26, 0
    %p381 = por %p379, %p380
    %p382 = scmp.ne.s32.totalorder %s368, %s369
    %p383 = scmp.eq.s32.totalorder %s27, 1
    %p384 = por %p382, %p383
    %p386 = scmp.ne.s32.totalorder %s369, %s385
    %p387 = scmp.eq.s32.totalorder %s27, 0
    %p388 = por %p386, %p387
    %p389 = scmp.le.s32.totalorder 1, %s21
    %p390 = scmp.lt.s32.totalorder %s21, 3
    %p391 = pnand %p389, %p390
    %p392 = pneg %p391
    // Predicated region
    $region9: #{low_enhance_net.1} parent=5 // pred_check
      _
    $region10: #{low_enhance_net.1} parent=5 // pred_check_branch
      %394 = sbr.rel (%p391) target = $region12
    $region11: #{low_enhance_net.1} parent=5 // pred_region
      %s395 = ssub.s32 %s21, 1
      // Predicated region
      $region13: #{low_enhance_net.1} parent=11 // pred_check
        %p396 = pneg %p68
      $region14: #{low_enhance_net.1} parent=11 // pred_check_branch
        %398 = sbr.rel (%p396) target = $region16
      $region15: #{low_enhance_net.1} parent=11 // pred_region
        _
      $region16: #{low_enhance_net.1} parent=11 // pred_fallthru
        _
      // Predicated region
      $region17: #{low_enhance_net.1} parent=11 // pred_check
        %p399 = pneg %p89
      $region18: #{low_enhance_net.1} parent=11 // pred_check_branch
        %401 = sbr.rel (%p399) target = $region20
      $region19: #{low_enhance_net.1} parent=11 // pred_region
        _
      $region20: #{low_enhance_net.1} parent=11 // pred_fallthru
        _
      // Predicated region
      $region21: #{low_enhance_net.1} parent=11 // pred_check
        %p402 = pneg %p110
      $region22: #{low_enhance_net.1} parent=11 // pred_check_branch
        %404 = sbr.rel (%p402) target = $region24
      $region23: #{low_enhance_net.1} parent=11 // pred_region
        _
      $region24: #{low_enhance_net.1} parent=11 // pred_fallthru
        _
      // Predicated region
      $region25: #{low_enhance_net.1} parent=11 // pred_check
        %p405 = pneg %p131
      $region26: #{low_enhance_net.1} parent=11 // pred_check_branch
        %407 = sbr.rel (%p405) target = $region28
      $region27: #{low_enhance_net.1} parent=11 // pred_region
        _
      $region28: #{low_enhance_net.1} parent=11 // pred_fallthru
        _
      // Predicated region
      $region29: #{low_enhance_net.1} parent=11 // pred_check
        %p408 = pneg %p152
      $region30: #{low_enhance_net.1} parent=11 // pred_check_branch
        %410 = sbr.rel (%p408) target = $region32
      $region31: #{low_enhance_net.1} parent=11 // pred_region
        _
      $region32: #{low_enhance_net.1} parent=11 // pred_fallthru
        _
      // Predicated region
      $region33: #{low_enhance_net.1} parent=11 // pred_check
        %p411 = pneg %p173
      $region34: #{low_enhance_net.1} parent=11 // pred_check_branch
        %413 = sbr.rel (%p411) target = $region36
      $region35: #{low_enhance_net.1} parent=11 // pred_region
        _
      $region36: #{low_enhance_net.1} parent=11 // pred_fallthru
        _
    $region12: #{low_enhance_net.1} parent=5 // pred_fallthru
      _
    %p414 = scmp.lt.s32.totalorder %s21, 2
    // Predicated region
    $region37: #{low_enhance_net.1} parent=5 // pred_check
      %p415 = pneg %p414
    $region38: #{low_enhance_net.1} parent=5 // pred_check_branch
      %417 = sbr.rel (%p415) target = $region40
    $region39: #{low_enhance_net.1} parent=5 // pred_region
      // Predicated region
      $region41: #{low_enhance_net.1} parent=39 // pred_check
        %p418 = pneg %p41
      $region42: #{low_enhance_net.1} parent=39 // pred_check_branch
        %420 = sbr.rel (%p418) target = $region44
      $region43: #{low_enhance_net.1} parent=39 // pred_region
        %p421 = scmp.lt.s32.totalorder %s21, 1
        %s422 = scalar_select %p421, %s21, 1
        %s423 = smul.addr %s422, 2
        %s424 = smul.addr %s423, 2
        %s425 = scalar_lea.vmem %s0, %s424
      $region44: #{low_enhance_net.1} parent=39 // pred_fallthru
        _
    $region40: #{low_enhance_net.1} parent=5 // pred_fallthru
      _
    %p426 = scmp.le.s32.totalorder 1, %s21
    %p427 = scmp.lt.s32.totalorder %s21, 3
    %p428 = pnand %p426, %p427
    %p429 = pneg %p428
    // Predicated region
    $region45: #{low_enhance_net.1} parent=5 // pred_check
      _
    $region46: #{low_enhance_net.1} parent=5 // pred_check_branch
      %431 = sbr.rel (%p428) target = $region48
    $region47: #{low_enhance_net.1} parent=5 // pred_region
      %s432 = ssub.s32 %s21, 1
      %p433 = scmp.lt.s32.totalorder %s26, 1
      %s434 = scalar_select %p433, %s26, 1
      %s435 = smul.addr %s434, 2
      %s436 = smul.addr %s435, 2
      %s437 = scalar_lea.vmem %s0, %s436
      %p438 = pneg %p47
      %p439 = pneg %p44
      %p440 = pneg %p68
      %p441 = pneg %p65
      %p442 = pneg %p89
      %p443 = pneg %p86
      %p444 = pneg %p110
      %p445 = pneg %p107
      %p446 = pneg %p131
      %p447 = pneg %p128
      %p448 = pneg %p152
      %p449 = pneg %p149
      %p450 = pneg %p173
      %p451 = pneg %p170
      %p452 = pneg %p199
      %p453 = pneg %p196
      %p454 = scmp.lt.s32.totalorder %s26, 1
      %s455 = scalar_select %p454, %s26, 1
      %s456 = smul.addr %s455, 2
      %s457 = scalar_lea.vmem %s7, %s456
      %p458 = pneg %p225
      %p459 = pneg %p222
      %p460 = scmp.lt.s32.totalorder %s26, 1
      %s461 = scalar_select %p460, %s26, 1
      %s462 = smul.addr %s461, 2
      %s463 = scalar_lea.vmem %s8, %s462
      %p464 = pneg %p251
      %p465 = pneg %p248
      %p466 = scmp.lt.s32.totalorder %s26, 1
      %s467 = scalar_select %p466, %s26, 1
      %s468 = smul.addr %s467, 2
      %s469 = scalar_lea.vmem %s9, %s468
      %p470 = pneg %p277
      %p471 = pneg %p274
      %p472 = scmp.lt.s32.totalorder %s26, 1
      %s473 = scalar_select %p472, %s26, 1
      %s474 = smul.addr %s473, 2
      %s475 = scalar_lea.vmem %s10, %s474
      %p476 = pneg %p303
      %p477 = pneg %p300
      %p478 = scmp.lt.s32.totalorder %s26, 1
      %s479 = scalar_select %p478, %s26, 1
      %s480 = smul.addr %s479, 2
      %s481 = scalar_lea.vmem %s11, %s480
      %p482 = pneg %p329
      %p483 = pneg %p326
      %p484 = scmp.lt.s32.totalorder %s26, 1
      %s485 = scalar_select %p484, %s26, 1
      %s486 = smul.addr %s485, 2
      %s487 = scalar_lea.vmem %s12, %s486
      %p488 = pneg %p355
      %p489 = pneg %p352
      %p490 = scmp.lt.s32.totalorder %s26, 1
      %s491 = scalar_select %p490, %s26, 1
      %s492 = smul.addr %s491, 2
      %s493 = scalar_lea.vmem %s13, %s492
      %p494 = pneg %p381
      %p495 = pneg %p378
      %p496 = scmp.lt.s32.totalorder %s26, 1
      %s497 = scalar_select %p496, %s26, 1
      %s498 = smul.addr %s497, 2
      %s499 = scalar_lea.vmem %s14, %s498
      %p500 = scmp.lt.s32.totalorder %s26, 1
      %s501 = scalar_select %p500, %s26, 1
      %s502 = smul.addr %s501, 2
      %s503 = smul.addr %s502, 2
      %s504 = scalar_lea.vmem %s0, %s503
      %p505 = scmp.lt.s32.totalorder %s26, 1
      %s506 = scalar_select %p505, %s26, 1
      %s507 = smul.addr %s506, 2
      %s508 = scalar_lea.vmem %s7, %s507
      %p509 = scmp.lt.s32.totalorder %s26, 1
      %s510 = scalar_select %p509, %s26, 1
      %s511 = smul.addr %s510, 2
      %s512 = scalar_lea.vmem %s8, %s511
      %p513 = scmp.lt.s32.totalorder %s26, 1
      %s514 = scalar_select %p513, %s26, 1
      %s515 = smul.addr %s514, 2
      %s516 = scalar_lea.vmem %s9, %s515
      %p517 = scmp.lt.s32.totalorder %s26, 1
      %s518 = scalar_select %p517, %s26, 1
      %s519 = smul.addr %s518, 2
      %s520 = scalar_lea.vmem %s10, %s519
      %p521 = scmp.lt.s32.totalorder %s26, 1
      %s522 = scalar_select %p521, %s26, 1
      %s523 = smul.addr %s522, 2
      %s524 = scalar_lea.vmem %s11, %s523
      %p525 = scmp.lt.s32.totalorder %s26, 1
      %s526 = scalar_select %p525, %s26, 1
      %s527 = smul.addr %s526, 2
      %s528 = scalar_lea.vmem %s12, %s527
      %p529 = scmp.lt.s32.totalorder %s26, 1
      %s530 = scalar_select %p529, %s26, 1
      %s531 = smul.addr %s530, 2
      %s532 = scalar_lea.vmem %s13, %s531
      %p533 = scmp.lt.s32.totalorder %s26, 1
      %s534 = scalar_select %p533, %s26, 1
      %s535 = smul.addr %s534, 2
      %s536 = scalar_lea.vmem %s14, %s535
      %vm538 = vcmask 134144
      %539 = vst.msk [vmem:[#allocation2] sm:$0xf] %vm538, 0
      %vm540 = vcmask 273544
      %541 = vst.msk [vmem:[#allocation2 + $0x8] sm:$0xf] %vm540, 0
      %v542 = vlaneseq
      %v543 = vand.u32 %v542, 127
      %v544 = vadd.s32 %v543, 128
      %vm545 = vcmp.lt.s32.totalorder %v543, 0
      %v546 = vsub.s32 0, %v543
      %v547 = vsel %vm545, %v546, %v543
      %v548 = vshrl.u32 %v547, 4
      %v549 = vand.u32 %v547, 15
      %v550 = vsub.s32 0, %v549
      %v551 = vsel %vm545, %v550, %v549
      %vm552 = vcmp.lt.s32.totalorder %v544, 0
      %v553 = vsub.s32 0, %v544
      %v554 = vsel %vm552, %v553, %v544
      %v555 = vshrl.u32 %v554, 4
      %v556 = vand.u32 %v554, 15
      %v557 = vsub.s32 0, %v556
      %v558 = vsel %vm552, %v557, %v556
      %vm559 = vcmp.ne.s32.totalorder %v551, 0
      %vm560 = vcmp.ne.s32.totalorder %v558, 0
      %vm561 = vcmp.lt.s32.totalorder %v551, 0
      %vm562 = vcmp.lt.s32.totalorder %v558, 0
      %vm563 = vmand %vm561, %vm559
      %vm564 = vmand %vm562, %vm560
      %v565 = vadd.s32 %v551, 16
      %v566 = vadd.s32 %v558, 16
      %v567 = vsel %vm563, %v565, %v551
      %v568 = vsel %vm564, %v566, %v558
      %vm569 = vcmp.ne.s32.totalorder %v567, 0
      %vm570 = vcmp.ne.s32.totalorder %v568, 0
      %v571 = vsel %vm569, 1, 0
      %v572 = vsel %vm570, 1, 0
      %v573 = vcvt.s32.f32 %v571
      %v574 = vcvt.s32.f32 %v572
      %vm575 = vcmp.ne.s32.totalorder %v567, 15
      %vm576 = vcmp.ne.s32.totalorder %v568, 15
      %v577 = vsel %vm575, 1, 0
      %v578 = vsel %vm576, 1, 0
      %v579 = vcvt.s32.f32 %v577
      %v580 = vcvt.s32.f32 %v578
      %v581 = vld [vmem:[%s504] sm:$0xf]
      %v584 = vunpack.c.l.s4 1983009808
      %v585 = vunpack.c.0.s8 %v584
      %v586 = vlaneseq
      %v587 = vshrl.u32 %v586, 7
      %v588 = vsub.s32 %v585, %v587
      %v589 = vrot.slane %v581, %v588
      %590 = vrot.lane.b32.xlu0 %v589, 17
      %v591 = vpop.permute.xlu0 %590
      %v592 = vrot.slane %v591, 4
      %vm593 = vcmask 138240
      %v594 = vsel %vm593, %v592, %v591
      %vm597 = vcmask 1041544
      %vm598 = vcmask 1045508
      %vm599 = vmor %vm598, %vm597
      %600 = vst.msk [vmem:[#allocation2] sm:$0x33] %vm599, %v594
      %vm601 = vcmask 132096
      %602 = vst.msk [vmem:[#allocation2 + $0x8] sm:$0x3] %vm601, %v592
      %v603 = vld [vmem:[#allocation2] sm:$0x33]
      %v604 = vld [vmem:[#allocation2 + $0x8] sm:$0x3]
      %v607 = vunpack.c.l.b16 %v603
      %v608 = vunpack.c.h.b16 %v603
      %v609 = vunpack.c.l.b16 %v604
      %v610 = vpack.c.b16 %v607, %v607
      %v611 = vpack.c.b16 %v608, %v608
      %v612 = vpack.c.b16 %v609, %v609
      %v613 = vrot.slane %v610, 6
      %v614 = vrot.slane %v611, 6
      %v615 = vrot.slane %v612, 6
      %616 = vrot.lane.b32.xlu0 %v613, 112
      %v617 = vpop.permute.xlu0 %616
      %618 = vrot.lane.b32.xlu0 %v614, 112
      %v619 = vpop.permute.xlu0 %618
      %620 = vrot.lane.b32.xlu0 %v615, 112
      %v621 = vpop.permute.xlu0 %620
      %vm622 = vcmask 916480
      %v623 = vsel %vm622, %v617, %v619
      %v624 = vsel %vm622, %v619, %v621
      %625 = vrot.lane.b32.xlu0 %v610, 96
      %v626 = vpop.permute.xlu0 %625
      %627 = vrot.lane.b32.xlu0 %v611, 96
      %v628 = vpop.permute.xlu0 %627
      %629 = vrot.lane.b32.xlu0 %v612, 96
      %v630 = vpop.permute.xlu0 %629
      %vm631 = vcmask 785408
      %v632 = vsel %vm631, %v626, %v628
      %v633 = vsel %vm631, %v628, %v630
      %vm634 = vcmask 1041408
      %v637 = vsel %vm634, %v610, %v623
      %v640 = vsel %vm634, %v611, %v624
      %v643 = vsel %vm634, %v612, %v621
      %vm644 = vcmask 1043456
      %v646 = vsel %vm644, %v637, %v632
      %v648 = vsel %vm644, %v640, %v633
      %v650 = vsel %vm644, %v643, %v630
      %s651 = scalar_lea.vmem %s1, 2
      %v652 = vld [vmem:[%s651] sm:$0x3]
      %v653 = vld [vmem:[%s1] sm:$0x3]
      %vm654 = vcmask 97280
      %v656 = vsel %vm654, %v653, 0
      %vm658 = vcmask 1045504
      %v659 = vsel %vm658, %v646, 0
      %v661 = vsel %vm658, %v648, 0
      %663 = vmatprep.subr.bf16.mxu0 %v661
      %664 = vmatpush1.bf16.msra.mxu0 %v659
      %665 = vmatprep.subr.bf16.mxu0 0
      %666 = vmatpush1.bf16.msra.mxu0 0
      %667 = vmatprep.subr.bf16.mxu0 0
      %668 = vmatpush1.bf16.msra.mxu0 0
      %669 = vmatprep.subr.bf16.mxu0 0
      %670 = vmatpush1.bf16.msra.mxu0 0
      %671 = vmatprep.subr.bf16.mxu0 0
      %672 = vmatpush1.bf16.msra.mxu0 0
      %673 = vmatprep.subr.bf16.mxu0 0
      %674 = vmatpush1.bf16.msra.mxu0 0
      %675 = vmatprep.subr.bf16.mxu0 0
      %676 = vmatpush1.bf16.msra.mxu0 0
      %677 = vmatprep.subr.bf16.mxu0 0
      %678 = vmatpush1.bf16.msra.mxu0 0
      %679 = vmatprep.subr.bf16.mxu0 0
      %680 = vmatpush1.bf16.msra.mxu0 0
      %681 = vmatprep.subr.bf16.mxu0 0
      %682 = vmatpush1.bf16.msra.mxu0 0
      %683 = vmatprep.subr.bf16.mxu0 0
      %684 = vmatpush1.bf16.msra.mxu0 0
      %685 = vmatprep.subr.bf16.mxu0 0
      %686 = vmatpush1.bf16.msra.mxu0 0
      %687 = vmatprep.subr.bf16.mxu0 0
      %688 = vmatpush1.bf16.msra.mxu0 0
      %689 = vmatprep.subr.bf16.mxu0 0
      %690 = vmatpush1.bf16.msra.mxu0 0
      %691 = vmatprep.subr.bf16.mxu0 0
      %692 = vmatpush1.bf16.msra.mxu0 0
      %693 = vmatprep.subr.bf16.mxu0 0
      %694 = vmatpush1.bf16.msra.mxu0 0
      %695 = vmatprep.mubr.bf16.mxu0 0
      %696 = vmatmul.mubr.bf16.gmra.mrb[0].mxu0 %v656
      %v697 = vpop.f32.mrb[0].mxu0
      %v698 = vadd.f32 0.0, %v697
      %v699 = vpop.f32.mrb[0].mxu0
      %v700 = vadd.f32 0.0, %v699
      %v701 = vpop.f32.mrb[0].mxu0
      %v702 = vpop.f32.mrb[0].mxu0
      %703 = vdwg.mxu0
      %v704 = vmul.f32 %v698, %v573
      %v705 = vmul.f32 %v700, %v574
      %709 = vrot.lane.b32.xlu0 %v646, 127
      %v710 = vpop.permute.xlu0 %709
      %711 = vrot.lane.b32.xlu0 %v648, 127
      %v712 = vpop.permute.xlu0 %711
      %713 = vrot.lane.b32.xlu0 %v650, 127
      %v714 = vpop.permute.xlu0 %713
      %vm715 = vcmask 1039360
      %v716 = vsel %vm715, %v710, %v712
      %v717 = vsel %vm715, %v712, %v714
      %v719 = vsel %vm654, %v652, 0
      %v722 = vsel %vm658, %v716, 0
      %v725 = vsel %vm658, %v717, 0
      %727 = vmatprep.subr.bf16.mxu0 %v725
      %728 = vmatpush1.bf16.msra.mxu0 %v722
      %729 = vmatprep.subr.bf16.mxu0 0
      %730 = vmatpush1.bf16.msra.mxu0 0
      %731 = vmatprep.subr.bf16.mxu0 0
      %732 = vmatpush1.bf16.msra.mxu0 0
      %733 = vmatprep.subr.bf16.mxu0 0
      %734 = vmatpush1.bf16.msra.mxu0 0
      %735 = vmatprep.subr.bf16.mxu0 0
      %736 = vmatpush1.bf16.msra.mxu0 0
      %737 = vmatprep.subr.bf16.mxu0 0
      %738 = vmatpush1.bf16.msra.mxu0 0
      %739 = vmatprep.subr.bf16.mxu0 0
      %740 = vmatpush1.bf16.msra.mxu0 0
      %741 = vmatprep.subr.bf16.mxu0 0
      %742 = vmatpush1.bf16.msra.mxu0 0
      %743 = vmatprep.subr.bf16.mxu0 0
      %744 = vmatpush1.bf16.msra.mxu0 0
      %745 = vmatprep.subr.bf16.mxu0 0
      %746 = vmatpush1.bf16.msra.mxu0 0
      %747 = vmatprep.subr.bf16.mxu0 0
      %748 = vmatpush1.bf16.msra.mxu0 0
      %749 = vmatprep.subr.bf16.mxu0 0
      %750 = vmatpush1.bf16.msra.mxu0 0
      %751 = vmatprep.subr.bf16.mxu0 0
      %752 = vmatpush1.bf16.msra.mxu0 0
      %753 = vmatprep.subr.bf16.mxu0 0
      %754 = vmatpush1.bf16.msra.mxu0 0
      %755 = vmatprep.subr.bf16.mxu0 0
      %756 = vmatpush1.bf16.msra.mxu0 0
      %757 = vmatprep.subr.bf16.mxu0 0
      %758 = vmatpush1.bf16.msra.mxu0 0
      %759 = vmatprep.mubr.bf16.mxu0 0
      %760 = vmatmul.mubr.bf16.gmra.mrb[0].mxu0 %v719
      %v761 = vpop.f32.mrb[0].mxu0
      %v762 = vadd.f32 %v704, %v761
      %v763 = vpop.f32.mrb[0].mxu0
      %v764 = vadd.f32 %v705, %v763
      %v765 = vpop.f32.mrb[0].mxu0
      %v766 = vpop.f32.mrb[0].mxu0
      %767 = vdwg.mxu0
      %s768 = scalar_lea.vmem %s1, 4
      %v769 = vld [vmem:[%s768] sm:$0x3]
      %770 = vrot.lane.b32.xlu0 %v646, 126
      %v771 = vpop.permute.xlu0 %770
      %772 = vrot.lane.b32.xlu0 %v648, 126
      %v773 = vpop.permute.xlu0 %772
      %774 = vrot.lane.b32.xlu0 %v650, 126
      %v775 = vpop.permute.xlu0 %774
      %vm776 = vcmask 1031168
      %v777 = vsel %vm776, %v771, %v773
      %v778 = vsel %vm776, %v773, %v775
      %v780 = vsel %vm654, %v769, 0
      %v783 = vsel %vm658, %v777, 0
      %v786 = vsel %vm658, %v778, 0
      %788 = vmatprep.subr.bf16.mxu0 %v786
      %789 = vmatpush1.bf16.msra.mxu0 %v783
      %790 = vmatprep.subr.bf16.mxu0 0
      %791 = vmatpush1.bf16.msra.mxu0 0
      %792 = vmatprep.subr.bf16.mxu0 0
      %793 = vmatpush1.bf16.msra.mxu0 0
      %794 = vmatprep.subr.bf16.mxu0 0
      %795 = vmatpush1.bf16.msra.mxu0 0
      %796 = vmatprep.subr.bf16.mxu0 0
      %797 = vmatpush1.bf16.msra.mxu0 0
      %798 = vmatprep.subr.bf16.mxu0 0
      %799 = vmatpush1.bf16.msra.mxu0 0
      %800 = vmatprep.subr.bf16.mxu0 0
      %801 = vmatpush1.bf16.msra.mxu0 0
      %802 = vmatprep.subr.bf16.mxu0 0
      %803 = vmatpush1.bf16.msra.mxu0 0
      %804 = vmatprep.subr.bf16.mxu0 0
      %805 = vmatpush1.bf16.msra.mxu0 0
      %806 = vmatprep.subr.bf16.mxu0 0
      %807 = vmatpush1.bf16.msra.mxu0 0
      %808 = vmatprep.subr.bf16.mxu0 0
      %809 = vmatpush1.bf16.msra.mxu0 0
      %810 = vmatprep.subr.bf16.mxu0 0
      %811 = vmatpush1.bf16.msra.mxu0 0
      %812 = vmatprep.subr.bf16.mxu0 0
      %813 = vmatpush1.bf16.msra.mxu0 0
      %814 = vmatprep.subr.bf16.mxu0 0
      %815 = vmatpush1.bf16.msra.mxu0 0
      %816 = vmatprep.subr.bf16.mxu0 0
      %817 = vmatpush1.bf16.msra.mxu0 0
      %818 = vmatprep.subr.bf16.mxu0 0
      %819 = vmatpush1.bf16.msra.mxu0 0
      %820 = vmatprep.mubr.bf16.mxu0 0
      %821 = vmatmul.mubr.bf16.gmra.mrb[0].mxu0 %v780
      %v822 = vpop.f32.mrb[0].mxu0
      %v823 = vadd.f32 0.0, %v822
      %v824 = vpop.f32.mrb[0].mxu0
      %v825 = vadd.f32 0.0, %v824
      %v826 = vpop.f32.mrb[0].mxu0
      %v827 = vpop.f32.mrb[0].mxu0
      %828 = vdwg.mxu0
      %v829 = vmul.f32 %v823, %v579
      %v830 = vmul.f32 %v825, %v580
      %v831 = vadd.f32 %v762, %v829
      %v832 = vadd.f32 %v764, %v830
      %v833 = vld [vmem:[%s2] sm:$0xf]
      %835 = vset.pattern.permute.xlu0 0
      %836 = vperm.xlu0 %835, %v833
      %v837 = vpop.permute.xlu0 %836
      %v839 = vadd.f32 %v831, %v837
      %v840 = vadd.f32 %v832, %v837
      %v841 = vmul.f32 %v839, 0.01
      %v842 = vmul.f32 %v840, 0.01
      %v843 = vmax.f32 %v839, %v841
      %v844 = vmax.f32 %v840, %v842
      %v845 = vpack.c.bf16 %v843, %v843
      %v846 = vpack.c.bf16 %v844, %v844
      %v849 = vunpack.c.l.b16 %v845
      %v850 = vunpack.c.l.b16 %v846
      %v851 = vpack.c.b16 %v850, %v849
      %852 = vrot.lane.b32.xlu0 %v851, 17
      %v853 = vpop.permute.xlu0 %852
      %v854 = vrot.slane %v853, 4
      %v855 = vsel %vm593, %v854, %v853
      %858 = vst.msk [vmem:[#allocation2] sm:$0x33] %vm599, %v855
      %859 = vst.msk [vmem:[#allocation2 + $0x8] sm:$0x3] %vm601, %v854
      %v860 = vld [vmem:[#allocation2] sm:$0x33]
      %v861 = vld [vmem:[#allocation2 + $0x8] sm:$0x3]
      %v864 = vunpack.c.l.b16 %v860
      %v865 = vunpack.c.h.b16 %v860
      %v866 = vunpack.c.l.b16 %v861
      %v867 = vpack.c.b16 %v864, %v864
      %v868 = vpack.c.b16 %v865, %v865
      %v869 = vpack.c.b16 %v866, %v866
      %v870 = vrot.slane %v867, 6
      %v871 = vrot.slane %v868, 6
      %v872 = vrot.slane %v869, 6
      %873 = vrot.lane.b32.xlu0 %v870, 112
      %v874 = vpop.permute.xlu0 %873
      %875 = vrot.lane.b32.xlu0 %v871, 112
      %v876 = vpop.permute.xlu0 %875
      %877 = vrot.lane.b32.xlu0 %v872, 112
      %v878 = vpop.permute.xlu0 %877
      %v879 = vsel %vm622, %v874, %v876
      %v880 = vsel %vm622, %v876, %v878
      %881 = vrot.lane.b32.xlu0 %v867, 96
      %v882 = vpop.permute.xlu0 %881
      %883 = vrot.lane.b32.xlu0 %v868, 96
      %v884 = vpop.permute.xlu0 %883
      %885 = vrot.lane.b32.xlu0 %v869, 96
      %v886 = vpop.permute.xlu0 %885
      %v887 = vsel %vm631, %v882, %v884
      %v888 = vsel %vm631, %v884, %v886
      %v891 = vsel %vm634, %v867, %v879
      %v894 = vsel %vm634, %v868, %v880
      %v897 = vsel %vm634, %v869, %v878
      %v899 = vsel %vm644, %v891, %v887
      %v901 = vsel %vm644, %v894, %v888
      %v903 = vsel %vm644, %v897, %v886
      %s904 = scalar_lea.vmem %s3, 4
      %v905 = vld [vmem:[%s904] sm:$0xf]
      %v906 = vld [vmem:[%s3] sm:$0xf]
      %v908 = vsel %vm654, %v906, 0
      %v910 = vsel %vm658, %v899, 0
      %v912 = vsel %vm658, %v901, 0
      %914 = vmatprep.subr.bf16.mxu0 %v912
      %915 = vmatpush1.bf16.msra.mxu0 %v910
      %916 = vmatprep.subr.bf16.mxu0 0
      %917 = vmatpush1.bf16.msra.mxu0 0
      %918 = vmatprep.subr.bf16.mxu0 0
      %919 = vmatpush1.bf16.msra.mxu0 0
      %920 = vmatprep.subr.bf16.mxu0 0
      %921 = vmatpush1.bf16.msra.mxu0 0
      %922 = vmatprep.subr.bf16.mxu0 0
      %923 = vmatpush1.bf16.msra.mxu0 0
      %924 = vmatprep.subr.bf16.mxu0 0
      %925 = vmatpush1.bf16.msra.mxu0 0
      %926 = vmatprep.subr.bf16.mxu0 0
      %927 = vmatpush1.bf16.msra.mxu0 0
      %928 = vmatprep.subr.bf16.mxu0 0
      %929 = vmatpush1.bf16.msra.mxu0 0
      %930 = vmatprep.subr.bf16.mxu0 0
      %931 = vmatpush1.bf16.msra.mxu0 0
      %932 = vmatprep.subr.bf16.mxu0 0
      %933 = vmatpush1.bf16.msra.mxu0 0
      %934 = vmatprep.subr.bf16.mxu0 0
      %935 = vmatpush1.bf16.msra.mxu0 0
      %936 = vmatprep.subr.bf16.mxu0 0
      %937 = vmatpush1.bf16.msra.mxu0 0
      %938 = vmatprep.subr.bf16.mxu0 0
      %939 = vmatpush1.bf16.msra.mxu0 0
      %940 = vmatprep.subr.bf16.mxu0 0
      %941 = vmatpush1.bf16.msra.mxu0 0
      %942 = vmatprep.subr.bf16.mxu0 0
      %943 = vmatpush1.bf16.msra.mxu0 0
      %944 = vmatprep.subr.bf16.mxu0 0
      %945 = vmatpush1.bf16.msra.mxu0 0
      %946 = vmatprep.mubr.bf16.mxu0 0
      %947 = vmatmul.mubr.bf16.gmra.mrb[0].mxu0 %v908
      %v948 = vpop.f32.mrb[0].mxu0
      %v949 = vadd.f32 0.0, %v948
      %v950 = vpop.f32.mrb[0].mxu0
      %v951 = vadd.f32 0.0, %v950
      %v952 = vpop.f32.mrb[0].mxu0
      %v953 = vpop.f32.mrb[0].mxu0
      %954 = vdwg.mxu0
      %v955 = vmul.f32 %v949, %v573
      %v956 = vmul.f32 %v951, %v574
      %960 = vrot.lane.b32.xlu0 %v899, 127
      %v961 = vpop.permute.xlu0 %960
      %962 = vrot.lane.b32.xlu0 %v901, 127
      %v963 = vpop.permute.xlu0 %962
      %964 = vrot.lane.b32.xlu0 %v903, 127
      %v965 = vpop.permute.xlu0 %964
      %v966 = vsel %vm715, %v961, %v963
      %v967 = vsel %vm715, %v963, %v965
      %v969 = vsel %vm654, %v905, 0
      %v972 = vsel %vm658, %v966, 0
      %v975 = vsel %vm658, %v967, 0
      %977 = vmatprep.subr.bf16.mxu0 %v975
      %978 = vmatpush1.bf16.msra.mxu0 %v972
      %979 = vmatprep.subr.bf16.mxu0 0
      %980 = vmatpush1.bf16.msra.mxu0 0
      %981 = vmatprep.subr.bf16.mxu0 0
      %982 = vmatpush1.bf16.msra.mxu0 0
      %983 = vmatprep.subr.bf16.mxu0 0
      %984 = vmatpush1.bf16.msra.mxu0 0
      %985 = vmatprep.subr.bf16.mxu0 0
      %986 = vmatpush1.bf16.msra.mxu0 0
      %987 = vmatprep.subr.bf16.mxu0 0
      %988 = vmatpush1.bf16.msra.mxu0 0
      %989 = vmatprep.subr.bf16.mxu0 0
      %990 = vmatpush1.bf16.msra.mxu0 0
      %991 = vmatprep.subr.bf16.mxu0 0
      %992 = vmatpush1.bf16.msra.mxu0 0
      %993 = vmatprep.subr.bf16.mxu0 0
      %994 = vmatpush1.bf16.msra.mxu0 0
      %995 = vmatprep.subr.bf16.mxu0 0
      %996 = vmatpush1.bf16.msra.mxu0 0
      %997 = vmatprep.subr.bf16.mxu0 0
      %998 = vmatpush1.bf16.msra.mxu0 0
      %999 = vmatprep.subr.bf16.mxu0 0
      %1000 = vmatpush1.bf16.msra.mxu0 0
      %1001 = vmatprep.subr.bf16.mxu0 0
      %1002 = vmatpush1.bf16.msra.mxu0 0
      %1003 = vmatprep.subr.bf16.mxu0 0
      %1004 = vmatpush1.bf16.msra.mxu0 0
      %1005 = vmatprep.subr.bf16.mxu0 0
      %1006 = vmatpush1.bf16.msra.mxu0 0
      %1007 = vmatprep.subr.bf16.mxu0 0
      %1008 = vmatpush1.bf16.msra.mxu0 0
      %1009 = vmatprep.mubr.bf16.mxu0 0
      %1010 = vmatmul.mubr.bf16.gmra.mrb[0].mxu0 %v969
      %v1011 = vpop.f32.mrb[0].mxu0
      %v1012 = vadd.f32 %v955, %v1011
      %v1013 = vpop.f32.mrb[0].mxu0
      %v1014 = vadd.f32 %v956, %v1013
      %v1015 = vpop.f32.mrb[0].mxu0
      %v1016 = vpop.f32.mrb[0].mxu0
      %1017 = vdwg.mxu0
      %s1018 = scalar_lea.vmem %s3, 8
      %v1019 = vld [vmem:[%s1018] sm:$0xf]
      %1020 = vrot.lane.b32.xlu0 %v899, 126
      %v1021 = vpop.permute.xlu0 %1020
      %1022 = vrot.lane.b32.xlu0 %v901, 126
      %v1023 = vpop.permute.xlu0 %1022
      %1024 = vrot.lane.b32.xlu0 %v903, 126
      %v1025 = vpop.permute.xlu0 %1024
      %v1026 = vsel %vm776, %v1021, %v1023
      %v1027 = vsel %vm776, %v1023, %v1025
      %v1029 = vsel %vm654, %v1019, 0
      %v1032 = vsel %vm658, %v1026, 0
      %v1035 = vsel %vm658, %v1027, 0
      %1037 = vmatprep.subr.bf16.mxu0 %v1035
      %1038 = vmatpush1.bf16.msra.mxu0 %v1032
      %1039 = vmatprep.subr.bf16.mxu0 0
      %1040 = vmatpush1.bf16.msra.mxu0 0
      %1041 = vmatprep.subr.bf16.mxu0 0
      %1042 = vmatpush1.bf16.msra.mxu0 0
      %1043 = vmatprep.subr.bf16.mxu0 0
      %1044 = vmatpush1.bf16.msra.mxu0 0
      %1045 = vmatprep.subr.bf16.mxu0 0
      %1046 = vmatpush1.bf16.msra.mxu0 0
      %1047 = vmatprep.subr.bf16.mxu0 0
      %1048 = vmatpush1.bf16.msra.mxu0 0
      %1049 = vmatprep.subr.bf16.mxu0 0
      %1050 = vmatpush1.bf16.msra.mxu0 0
      %1051 = vmatprep.subr.bf16.mxu0 0
      %1052 = vmatpush1.bf16.msra.mxu0 0
      %1053 = vmatprep.subr.bf16.mxu0 0
      %1054 = vmatpush1.bf16.msra.mxu0 0
      %1055 = vmatprep.subr.bf16.mxu0 0
      %1056 = vmatpush1.bf16.msra.mxu0 0
      %1057 = vmatprep.subr.bf16.mxu0 0
      %1058 = vmatpush1.bf16.msra.mxu0 0
      %1059 = vmatprep.subr.bf16.mxu0 0
      %1060 = vmatpush1.bf16.msra.mxu0 0
      %1061 = vmatprep.subr.bf16.mxu0 0
      %1062 = vmatpush1.bf16.msra.mxu0 0
      %1063 = vmatprep.subr.bf16.mxu0 0
      %1064 = vmatpush1.bf16.msra.mxu0 0
      %1065 = vmatprep.subr.bf16.mxu0 0
      %1066 = vmatpush1.bf16.msra.mxu0 0
      %1067 = vmatprep.subr.bf16.mxu0 0
      %1068 = vmatpush1.bf16.msra.mxu0 0
      %1069 = vmatprep.mubr.bf16.mxu0 0
      %1070 = vmatmul.mubr.bf16.gmra.mrb[0].mxu0 %v1029
      %v1071 = vpop.f32.mrb[0].mxu0
      %v1072 = vadd.f32 0.0, %v1071
      %v1073 = vpop.f32.mrb[0].mxu0
      %v1074 = vadd.f32 0.0, %v1073
      %v1075 = vpop.f32.mrb[0].mxu0
      %v1076 = vpop.f32.mrb[0].mxu0
      %1077 = vdwg.mxu0
      %v1078 = vmul.f32 %v1072, %v579
      %v1079 = vmul.f32 %v1074, %v580
      %v1080 = vadd.f32 %v1012, %v1078
      %v1081 = vadd.f32 %v1014, %v1079
      %v1082 = vld [vmem:[%s4] sm:$0xff]
      %1084 = vset.pattern.permute.xlu0 0
      %1085 = vperm.xlu0 %1084, %v1082
      %v1086 = vpop.permute.xlu0 %1085
      %v1088 = vadd.f32 %v1080, %v1086
      %v1089 = vadd.f32 %v1081, %v1086
      %v1090 = vmul.f32 %v1088, 0.01
      %v1091 = vmul.f32 %v1089, 0.01
      %v1092 = vmax.f32 %v1088, %v1090
      %v1093 = vmax.f32 %v1089, %v1091
      %v1094 = vpack.c.bf16 %v1092, %v1092
      %v1095 = vpack.c.bf16 %v1093, %v1093
      %v1098 = vunpack.c.l.b16 %v1094
      %v1099 = vunpack.c.l.b16 %v1095
      %v1100 = vpack.c.b16 %v1099, %v1098
      %1101 = vrot.lane.b32.xlu0 %v1100, 17
      %v1102 = vpop.permute.xlu0 %1101
      %v1103 = vrot.slane %v1102, 4
      %v1104 = vsel %vm593, %v1103, %v1102
      %vm1107 = vcmask 1043592
      %vm1108 = vcmask 1047556
      %vm1109 = vmor %vm1108, %vm1107
      %1110 = vst.msk [vmem:[#allocation2] sm:$0xff] %vm1109, %v1104
      %1111 = vst.msk [vmem:[#allocation2 + $0x8] sm:$0xf] %vm538, %v1103
      %v1112 = vld [vmem:[#allocation2] sm:$0xff]
      %v1113 = vld [vmem:[#allocation2 + $0x8] sm:$0xf]
      %v1116 = vunpack.c.l.b16 %v1112
      %v1117 = vunpack.c.h.b16 %v1112
      %v1118 = vunpack.c.l.b16 %v1113
      %v1119 = vpack.c.b16 %v1116, %v1116
      %v1120 = vpack.c.b16 %v1117, %v1117
      %v1121 = vpack.c.b16 %v1118, %v1118
      %1122 = vrot.lane.b32.xlu0 %v1119, 112
      %v1123 = vpop.permute.xlu0 %1122
      %1124 = vrot.lane.b32.xlu0 %v1120, 112
      %v1125 = vpop.permute.xlu0 %1124
      %1126 = vrot.lane.b32.xlu0 %v1121, 112
      %v1127 = vpop.permute.xlu0 %1126
      %v1128 = vsel %vm622, %v1123, %v1125
      %v1129 = vsel %vm622, %v1125, %v1127
      %1130 = vrot.lane.b32.xlu0 %v1119, 96
      %v1131 = vpop.permute.xlu0 %1130
      %1132 = vrot.lane.b32.xlu0 %v1120, 96
      %v1133 = vpop.permute.xlu0 %1132
      %1134 = vrot.lane.b32.xlu0 %v1121, 96
      %v1135 = vpop.permute.xlu0 %1134
      %v1136 = vsel %vm631, %v1131, %v1133
      %v1137 = vsel %vm631, %v1133, %v1135
      %v1140 = vsel %vm644, %v1119, %v1128
      %v1143 = vsel %vm644, %v1120, %v1129
      %v1146 = vsel %vm644, %v1121, %v1127
      %s1147 = scalar_lea.vmem %s5, 4
      %v1148 = vld [vmem:[%s1147] sm:$0xf]
      %v1151 = vld [vmem:[%s5] sm:$0xf]
      %vm1152 = vcmask 195584
      %v1154 = vsel %vm1152, %v1151, 0
      %v1157 = vsel %vm644, %v1136, 0
      %v1160 = vsel %vm644, %v1137, 0
      %1162 = vmatprep.subr.bf16.mxu0 %v1143
      %1163 = vmatpush1.bf16.msra.mxu0 %v1140
      %1164 = vmatprep.subr.bf16.mxu0 %v1160
      %1165 = vmatpush1.bf16.msra.mxu0 %v1157
      %1166 = vmatprep.subr.bf16.mxu0 0
      %1167 = vmatpush1.bf16.msra.mxu0 0
      %1168 = vmatprep.subr.bf16.mxu0 0
      %1169 = vmatpush1.bf16.msra.mxu0 0
      %1170 = vmatprep.subr.bf16.mxu0 0
      %1171 = vmatpush1.bf16.msra.mxu0 0
      %1172 = vmatprep.subr.bf16.mxu0 0
      %1173 = vmatpush1.bf16.msra.mxu0 0
      %1174 = vmatprep.subr.bf16.mxu0 0
      %1175 = vmatpush1.bf16.msra.mxu0 0
      %1176 = vmatprep.subr.bf16.mxu0 0
      %1177 = vmatpush1.bf16.msra.mxu0 0
      %1178 = vmatprep.subr.bf16.mxu0 0
      %1179 = vmatpush1.bf16.msra.mxu0 0
      %1180 = vmatprep.subr.bf16.mxu0 0
      %1181 = vmatpush1.bf16.msra.mxu0 0
      %1182 = vmatprep.subr.bf16.mxu0 0
      %1183 = vmatpush1.bf16.msra.mxu0 0
      %1184 = vmatprep.subr.bf16.mxu0 0
      %1185 = vmatpush1.bf16.msra.mxu0 0
      %1186 = vmatprep.subr.bf16.mxu0 0
      %1187 = vmatpush1.bf16.msra.mxu0 0
      %1188 = vmatprep.subr.bf16.mxu0 0
      %1189 = vmatpush1.bf16.msra.mxu0 0
      %1190 = vmatprep.subr.bf16.mxu0 0
      %1191 = vmatpush1.bf16.msra.mxu0 0
      %1192 = vmatprep.subr.bf16.mxu0 0
      %1193 = vmatpush1.bf16.msra.mxu0 0
      %1194 = vmatprep.mubr.bf16.mxu0 0
      %1195 = vmatmul.mubr.bf16.gmra.mrb[0].mxu0 %v1154
      %v1196 = vpop.f32.mrb[0].mxu0
      %v1197 = vadd.f32 0.0, %v1196
      %v1198 = vpop.f32.mrb[0].mxu0
      %v1199 = vadd.f32 0.0, %v1198
      %v1200 = vpop.f32.mrb[0].mxu0
      %v1201 = vpop.f32.mrb[0].mxu0
      %1202 = vdwg.mxu0
      %v1203 = vmul.f32 %v1197, %v573
      %v1204 = vmul.f32 %v1199, %v574
      %1208 = vrot.lane.b32.xlu0 %v1140, 127
      %v1209 = vpop.permute.xlu0 %1208
      %1210 = vrot.lane.b32.xlu0 %v1143, 127
      %v1211 = vpop.permute.xlu0 %1210
      %1212 = vrot.lane.b32.xlu0 %v1146, 127
      %v1213 = vpop.permute.xlu0 %1212
      %1214 = vrot.lane.b32.xlu0 %v1136, 127
      %v1215 = vpop.permute.xlu0 %1214
      %1216 = vrot.lane.b32.xlu0 %v1137, 127
      %v1217 = vpop.permute.xlu0 %1216
      %1218 = vrot.lane.b32.xlu0 %v1135, 127
      %v1219 = vpop.permute.xlu0 %1218
      %v1220 = vsel %vm715, %v1209, %v1211
      %v1221 = vsel %vm715, %v1211, %v1213
      %v1222 = vsel %vm715, %v1215, %v1217
      %v1223 = vsel %vm715, %v1217, %v1219
      %v1227 = vsel %vm1152, %v1148, 0
      %v1230 = vsel %vm644, %v1222, 0
      %v1233 = vsel %vm644, %v1223, 0
      %1235 = vmatprep.subr.bf16.mxu0 %v1221
      %1236 = vmatpush1.bf16.msra.mxu0 %v1220
      %1237 = vmatprep.subr.bf16.mxu0 %v1233
      %1238 = vmatpush1.bf16.msra.mxu0 %v1230
      %1239 = vmatprep.subr.bf16.mxu0 0
      %1240 = vmatpush1.bf16.msra.mxu0 0
      %1241 = vmatprep.subr.bf16.mxu0 0
      %1242 = vmatpush1.bf16.msra.mxu0 0
      %1243 = vmatprep.subr.bf16.mxu0 0
      %1244 = vmatpush1.bf16.msra.mxu0 0
      %1245 = vmatprep.subr.bf16.mxu0 0
      %1246 = vmatpush1.bf16.msra.mxu0 0
      %1247 = vmatprep.subr.bf16.mxu0 0
      %1248 = vmatpush1.bf16.msra.mxu0 0
      %1249 = vmatprep.subr.bf16.mxu0 0
      %1250 = vmatpush1.bf16.msra.mxu0 0
      %1251 = vmatprep.subr.bf16.mxu0 0
      %1252 = vmatpush1.bf16.msra.mxu0 0
      %1253 = vmatprep.subr.bf16.mxu0 0
      %1254 = vmatpush1.bf16.msra.mxu0 0
      %1255 = vmatprep.subr.bf16.mxu0 0
      %1256 = vmatpush1.bf16.msra.mxu0 0
      %1257 = vmatprep.subr.bf16.mxu0 0
      %1258 = vmatpush1.bf16.msra.mxu0 0
      %1259 = vmatprep.subr.bf16.mxu0 0
      %1260 = vmatpush1.bf16.msra.mxu0 0
      %1261 = vmatprep.subr.bf16.mxu0 0
      %1262 = vmatpush1.bf16.msra.mxu0 0
      %1263 = vmatprep.subr.bf16.mxu0 0
      %1264 = vmatpush1.bf16.msra.mxu0 0
      %1265 = vmatprep.subr.bf16.mxu0 0
      %1266 = vmatpush1.bf16.msra.mxu0 0
      %1267 = vmatprep.mubr.bf16.mxu0 0
      %1268 = vmatmul.mubr.bf16.gmra.mrb[0].mxu0 %v1227
      %v1269 = vpop.f32.mrb[0].mxu0
      %v1270 = vadd.f32 %v1203, %v1269
      %v1271 = vpop.f32.mrb[0].mxu0
      %v1272 = vadd.f32 %v1204, %v1271
      %v1273 = vpop.f32.mrb[0].mxu0
      %v1274 = vpop.f32.mrb[0].mxu0
      %1275 = vdwg.mxu0
      %s1276 = scalar_lea.vmem %s5, 8
      %v1277 = vld [vmem:[%s1276] sm:$0xf]
      %1278 = vrot.lane.b32.xlu0 %v1140, 126
      %v1279 = vpop.permute.xlu0 %1278
      %1280 = vrot.lane.b32.xlu0 %v1143, 126
      %v1281 = vpop.permute.xlu0 %1280
      %1282 = vrot.lane.b32.xlu0 %v1146, 126
      %v1283 = vpop.permute.xlu0 %1282
      %1284 = vrot.lane.b32.xlu0 %v1136, 126
      %v1285 = vpop.permute.xlu0 %1284
      %1286 = vrot.lane.b32.xlu0 %v1137, 126
      %v1287 = vpop.permute.xlu0 %1286
      %1288 = vrot.lane.b32.xlu0 %v1135, 126
      %v1289 = vpop.permute.xlu0 %1288
      %v1290 = vsel %vm776, %v1279, %v1281
      %v1291 = vsel %vm776, %v1281, %v1283
      %v1292 = vsel %vm776, %v1285, %v1287
      %v1293 = vsel %vm776, %v1287, %v1289
      %v1297 = vsel %vm1152, %v1277, 0
      %v1300 = vsel %vm644, %v1292, 0
      %v1303 = vsel %vm644, %v1293, 0
      %1305 = vmatprep.subr.bf16.mxu0 %v1291
      %1306 = vmatpush1.bf16.msra.mxu0 %v1290
      %1307 = vmatprep.subr.bf16.mxu0 %v1303
      %1308 = vmatpush1.bf16.msra.mxu0 %v1300
      %1309 = vmatprep.subr.bf16.mxu0 0
      %1310 = vmatpush1.bf16.msra.mxu0 0
      %1311 = vmatprep.subr.bf16.mxu0 0
      %1312 = vmatpush1.bf16.msra.mxu0 0
      %1313 = vmatprep.subr.bf16.mxu0 0
      %1314 = vmatpush1.bf16.msra.mxu0 0
      %1315 = vmatprep.subr.bf16.mxu0 0
      %1316 = vmatpush1.bf16.msra.mxu0 0
      %1317 = vmatprep.subr.bf16.mxu0 0
      %1318 = vmatpush1.bf16.msra.mxu0 0
      %1319 = vmatprep.subr.bf16.mxu0 0
      %1320 = vmatpush1.bf16.msra.mxu0 0
      %1321 = vmatprep.subr.bf16.mxu0 0
      %1322 = vmatpush1.bf16.msra.mxu0 0
      %1323 = vmatprep.subr.bf16.mxu0 0
      %1324 = vmatpush1.bf16.msra.mxu0 0
      %1325 = vmatprep.subr.bf16.mxu0 0
      %1326 = vmatpush1.bf16.msra.mxu0 0
      %1327 = vmatprep.subr.bf16.mxu0 0
      %1328 = vmatpush1.bf16.msra.mxu0 0
      %1329 = vmatprep.subr.bf16.mxu0 0
      %1330 = vmatpush1.bf16.msra.mxu0 0
      %1331 = vmatprep.subr.bf16.mxu0 0
      %1332 = vmatpush1.bf16.msra.mxu0 0
      %1333 = vmatprep.subr.bf16.mxu0 0
      %1334 = vmatpush1.bf16.msra.mxu0 0
      %1335 = vmatprep.subr.bf16.mxu0 0
      %1336 = vmatpush1.bf16.msra.mxu0 0
      %1337 = vmatprep.mubr.bf16.mxu0 0
      %1338 = vmatmul.mubr.bf16.gmra.mrb[0].mxu0 %v1297
      %v1339 = vpop.f32.mrb[0].mxu0
      %v1340 = vadd.f32 0.0, %v1339
      %v1341 = vpop.f32.mrb[0].mxu0
      %v1342 = vadd.f32 0.0, %v1341
      %v1343 = vpop.f32.mrb[0].mxu0
      %v1344 = vpop.f32.mrb[0].mxu0
      %1345 = vdwg.mxu0
      %v1346 = vmul.f32 %v1340, %v579
      %v1347 = vmul.f32 %v1342, %v580
      %v1348 = vadd.f32 %v1270, %v1346
      %v1349 = vadd.f32 %v1272, %v1347
      %v1350 = vld [vmem:[%s6] sm:$0xff]
      %1352 = vset.pattern.permute.xlu0 0
      %1353 = vperm.xlu0 %1352, %v1350
      %v1354 = vpop.permute.xlu0 %1353
      %v1356 = vadd.f32 %v1348, %v1354
      %v1357 = vadd.f32 %v1349, %v1354
      %v1358 = vmul.f32 %v1356, 0.01
      %v1359 = vmul.f32 %v1357, 0.01
      %v1360 = vmax.f32 %v1356, %v1358
      %v1361 = vmax.f32 %v1357, %v1359
      %v1364 = vcombine.low %v1360, %v1361
      %v1366 = vunpack.c.l.s4 1966171168
      %v1367 = vunpack.c.0.s8 %v1366
      %v1368 = vlaneseq
      %v1369 = vshrl.u32 %v1368, 7
      %v1370 = vsub.s32 %v1367, %v1369
      %v1371 = vrot.slane %v1364, %v1370
      %v1373 = vunpack.c.l.s4 1966171168
      %v1374 = vunpack.c.0.s8 %v1373
      %v1375 = vlaneseq
      %v1376 = vshrl.u32 %v1375, 7
      %v1377 = vsub.s32 %v1374, %v1376
      %v1378 = vrot.slane %v1371, %v1377
      %v1380 = vlaneseq
      %vm1381 = vcmp.ge.s32.totalorder %v1380, 0
      %vm1382 = vcmp.lt.s32.totalorder %v1380, 256
      %vm1383 = vmand %vm1381, %vm1382
      %1384 = vst.msk [vmem:[%s508] sm:$0x3] %vm1383, %v1378
      %v1385 = vcombine.high %v1371, %v1371
      %v1387 = vunpack.c.l.s4 1966171168
      %v1388 = vunpack.c.0.s8 %v1387
      %v1389 = vlaneseq
      %v1390 = vshrl.u32 %v1389, 7
      %v1391 = vsub.s32 %v1388, %v1390
      %v1392 = vrot.slane %v1385, %v1391
      %1394 = vst.msk [vmem:[%s512] sm:$0x3] %vm1383, %v1392
      %v1395 = vcombine.high %v1378, %v1378
      %1397 = vst.msk [vmem:[%s516] sm:$0x3] %vm1383, %v1395
      %v1398 = vcombine.high %v1392, %v1392
      %1400 = vst.msk [vmem:[%s520] sm:$0x3] %vm1383, %v1398
      %v1401 = vcombine.high %v1360, %v1361
      %v1403 = vunpack.c.l.s4 1966171168
      %v1404 = vunpack.c.0.s8 %v1403
      %v1405 = vlaneseq
      %v1406 = vshrl.u32 %v1405, 7
      %v1407 = vsub.s32 %v1404, %v1406
      %v1408 = vrot.slane %v1401, %v1407
      %v1410 = vunpack.c.l.s4 1966171168
      %v1411 = vunpack.c.0.s8 %v1410
      %v1412 = vlaneseq
      %v1413 = vshrl.u32 %v1412, 7
      %v1414 = vsub.s32 %v1411, %v1413
      %v1415 = vrot.slane %v1408, %v1414
      %1417 = vst.msk [vmem:[%s524] sm:$0x3] %vm1383, %v1415
      %v1418 = vcombine.high %v1408, %v1408
      %v1420 = vunpack.c.l.s4 1966171168
      %v1421 = vunpack.c.0.s8 %v1420
      %v1422 = vlaneseq
      %v1423 = vshrl.u32 %v1422, 7
      %v1424 = vsub.s32 %v1421, %v1423
      %v1425 = vrot.slane %v1418, %v1424
      %1427 = vst.msk [vmem:[%s528] sm:$0x3] %vm1383, %v1425
      %v1428 = vcombine.high %v1415, %v1415
      %1430 = vst.msk [vmem:[%s532] sm:$0x3] %vm1383, %v1428
      %v1431 = vcombine.high %v1425, %v1425
      %1433 = vst.msk [vmem:[%s536] sm:$0x3] %vm1383, %v1431
      %p1434 = scmp.lt.s32.totalorder %s26, 1
      %s1435 = scalar_select %p1434, %s26, 1
      %s1436 = smul.addr %s1435, 2
      %s1437 = scalar_lea.vmem %s7, %s1436
      %p1438 = scmp.lt.s32.totalorder %s26, 1
      %s1439 = scalar_select %p1438, %s26, 1
      %s1440 = smul.addr %s1439, 2
      %s1441 = scalar_lea.vmem %s8, %s1440
      %p1442 = scmp.lt.s32.totalorder %s26, 1
      %s1443 = scalar_select %p1442, %s26, 1
      %s1444 = smul.addr %s1443, 2
      %s1445 = scalar_lea.vmem %s9, %s1444
      %p1446 = scmp.lt.s32.totalorder %s26, 1
      %s1447 = scalar_select %p1446, %s26, 1
      %s1448 = smul.addr %s1447, 2
      %s1449 = scalar_lea.vmem %s10, %s1448
      %p1450 = scmp.lt.s32.totalorder %s26, 1
      %s1451 = scalar_select %p1450, %s26, 1
      %s1452 = smul.addr %s1451, 2
      %s1453 = scalar_lea.vmem %s11, %s1452
      %p1454 = scmp.lt.s32.totalorder %s26, 1
      %s1455 = scalar_select %p1454, %s26, 1
      %s1456 = smul.addr %s1455, 2
      %s1457 = scalar_lea.vmem %s12, %s1456
      %p1458 = scmp.lt.s32.totalorder %s26, 1
      %s1459 = scalar_select %p1458, %s26, 1
      %s1460 = smul.addr %s1459, 2
      %s1461 = scalar_lea.vmem %s13, %s1460
      %p1462 = scmp.lt.s32.totalorder %s26, 1
      %s1463 = scalar_select %p1462, %s26, 1
      %s1464 = smul.addr %s1463, 2
      %s1465 = scalar_lea.vmem %s14, %s1464
      // Predicated region
      $region49: #{low_enhance_net.1} parent=47 // pred_check
        %p1466 = pneg %p196
      $region50: #{low_enhance_net.1} parent=47 // pred_check_branch
        %1468 = sbr.rel (%p1466) target = $region52
      $region51: #{low_enhance_net.1} parent=47 // pred_region
        _
      $region52: #{low_enhance_net.1} parent=47 // pred_fallthru
        _
      // Predicated region
      $region53: #{low_enhance_net.1} parent=47 // pred_check
        %p1469 = pneg %p222
      $region54: #{low_enhance_net.1} parent=47 // pred_check_branch
        %1471 = sbr.rel (%p1469) target = $region56
      $region55: #{low_enhance_net.1} parent=47 // pred_region
        _
      $region56: #{low_enhance_net.1} parent=47 // pred_fallthru
        _
      // Predicated region
      $region57: #{low_enhance_net.1} parent=47 // pred_check
        %p1472 = pneg %p248
      $region58: #{low_enhance_net.1} parent=47 // pred_check_branch
        %1474 = sbr.rel (%p1472) target = $region60
      $region59: #{low_enhance_net.1} parent=47 // pred_region
        _
      $region60: #{low_enhance_net.1} parent=47 // pred_fallthru
        _
      // Predicated region
      $region61: #{low_enhance_net.1} parent=47 // pred_check
        %p1475 = pneg %p274
      $region62: #{low_enhance_net.1} parent=47 // pred_check_branch
        %1477 = sbr.rel (%p1475) target = $region64
      $region63: #{low_enhance_net.1} parent=47 // pred_region
        _
      $region64: #{low_enhance_net.1} parent=47 // pred_fallthru
        _
      // Predicated region
      $region65: #{low_enhance_net.1} parent=47 // pred_check
        %p1478 = pneg %p300
      $region66: #{low_enhance_net.1} parent=47 // pred_check_branch
        %1480 = sbr.rel (%p1478) target = $region68
      $region67: #{low_enhance_net.1} parent=47 // pred_region
        _
      $region68: #{low_enhance_net.1} parent=47 // pred_fallthru
        _
      // Predicated region
      $region69: #{low_enhance_net.1} parent=47 // pred_check
        %p1481 = pneg %p326
      $region70: #{low_enhance_net.1} parent=47 // pred_check_branch
        %1483 = sbr.rel (%p1481) target = $region72
      $region71: #{low_enhance_net.1} parent=47 // pred_region
        _
      $region72: #{low_enhance_net.1} parent=47 // pred_fallthru
        _
      // Predicated region
      $region73: #{low_enhance_net.1} parent=47 // pred_check
        %p1484 = pneg %p352
      $region74: #{low_enhance_net.1} parent=47 // pred_check_branch
        %1486 = sbr.rel (%p1484) target = $region76
      $region75: #{low_enhance_net.1} parent=47 // pred_region
        _
      $region76: #{low_enhance_net.1} parent=47 // pred_fallthru
        _
      // Predicated region
      $region77: #{low_enhance_net.1} parent=47 // pred_check
        %p1487 = pneg %p378
      $region78: #{low_enhance_net.1} parent=47 // pred_check_branch
        %1489 = sbr.rel (%p1487) target = $region80
      $region79: #{low_enhance_net.1} parent=47 // pred_region
        _
      $region80: #{low_enhance_net.1} parent=47 // pred_fallthru
        _
    $region48: #{low_enhance_net.1} parent=5 // pred_fallthru
      _
    %p1490 = scmp.le.s32.totalorder 2, %s21
    // Predicated region
    $region81: #{low_enhance_net.1} parent=5 // pred_check
      %p1491 = pneg %p1490
    $region82: #{low_enhance_net.1} parent=5 // pred_check_branch
      %1493 = sbr.rel (%p1491) target = $region84
    $region83: #{low_enhance_net.1} parent=5 // pred_region
      %s1494 = ssub.s32 %s21, 2
      // Predicated region
      $region85: #{low_enhance_net.1} parent=83 // pred_check
        %p1495 = pneg %p202
      $region86: #{low_enhance_net.1} parent=83 // pred_check_branch
        %1497 = sbr.rel (%p1495) target = $region88
      $region87: #{low_enhance_net.1} parent=83 // pred_region
        %p1498 = scmp.lt.s32.totalorder %s27, 1
        %s1499 = scalar_select %p1498, %s27, 1
        %s1500 = smul.addr %s1499, 2
        %s1501 = scalar_lea.vmem %s7, %s1500
      $region88: #{low_enhance_net.1} parent=83 // pred_fallthru
        _
      // Predicated region
      $region89: #{low_enhance_net.1} parent=83 // pred_check
        %p1502 = pneg %p228
      $region90: #{low_enhance_net.1} parent=83 // pred_check_branch
        %1504 = sbr.rel (%p1502) target = $region92
      $region91: #{low_enhance_net.1} parent=83 // pred_region
        %p1505 = scmp.lt.s32.totalorder %s27, 1
        %s1506 = scalar_select %p1505, %s27, 1
        %s1507 = smul.addr %s1506, 2
        %s1508 = scalar_lea.vmem %s8, %s1507
      $region92: #{low_enhance_net.1} parent=83 // pred_fallthru
        _
      // Predicated region
      $region93: #{low_enhance_net.1} parent=83 // pred_check
        %p1509 = pneg %p254
      $region94: #{low_enhance_net.1} parent=83 // pred_check_branch
        %1511 = sbr.rel (%p1509) target = $region96
      $region95: #{low_enhance_net.1} parent=83 // pred_region
        %p1512 = scmp.lt.s32.totalorder %s27, 1
        %s1513 = scalar_select %p1512, %s27, 1
        %s1514 = smul.addr %s1513, 2
        %s1515 = scalar_lea.vmem %s9, %s1514
      $region96: #{low_enhance_net.1} parent=83 // pred_fallthru
        _
      // Predicated region
      $region97: #{low_enhance_net.1} parent=83 // pred_check
        %p1516 = pneg %p280
      $region98: #{low_enhance_net.1} parent=83 // pred_check_branch
        %1518 = sbr.rel (%p1516) target = $region100
      $region99: #{low_enhance_net.1} parent=83 // pred_region
        %p1519 = scmp.lt.s32.totalorder %s27, 1
        %s1520 = scalar_select %p1519, %s27, 1
        %s1521 = smul.addr %s1520, 2
        %s1522 = scalar_lea.vmem %s10, %s1521
      $region100: #{low_enhance_net.1} parent=83 // pred_fallthru
        _
      // Predicated region
      $region101: #{low_enhance_net.1} parent=83 // pred_check
        %p1523 = pneg %p306
      $region102: #{low_enhance_net.1} parent=83 // pred_check_branch
        %1525 = sbr.rel (%p1523) target = $region104
      $region103: #{low_enhance_net.1} parent=83 // pred_region
        %p1526 = scmp.lt.s32.totalorder %s27, 1
        %s1527 = scalar_select %p1526, %s27, 1
        %s1528 = smul.addr %s1527, 2
        %s1529 = scalar_lea.vmem %s11, %s1528
      $region104: #{low_enhance_net.1} parent=83 // pred_fallthru
        _
      // Predicated region
      $region105: #{low_enhance_net.1} parent=83 // pred_check
        %p1530 = pneg %p332
      $region106: #{low_enhance_net.1} parent=83 // pred_check_branch
        %1532 = sbr.rel (%p1530) target = $region108
      $region107: #{low_enhance_net.1} parent=83 // pred_region
        %p1533 = scmp.lt.s32.totalorder %s27, 1
        %s1534 = scalar_select %p1533, %s27, 1
        %s1535 = smul.addr %s1534, 2
        %s1536 = scalar_lea.vmem %s12, %s1535
      $region108: #{low_enhance_net.1} parent=83 // pred_fallthru
        _
      // Predicated region
      $region109: #{low_enhance_net.1} parent=83 // pred_check
        %p1537 = pneg %p358
      $region110: #{low_enhance_net.1} parent=83 // pred_check_branch
        %1539 = sbr.rel (%p1537) target = $region112
      $region111: #{low_enhance_net.1} parent=83 // pred_region
        %p1540 = scmp.lt.s32.totalorder %s27, 1
        %s1541 = scalar_select %p1540, %s27, 1
        %s1542 = smul.addr %s1541, 2
        %s1543 = scalar_lea.vmem %s13, %s1542
      $region112: #{low_enhance_net.1} parent=83 // pred_fallthru
        _
      // Predicated region
      $region113: #{low_enhance_net.1} parent=83 // pred_check
        %p1544 = pneg %p384
      $region114: #{low_enhance_net.1} parent=83 // pred_check_branch
        %1546 = sbr.rel (%p1544) target = $region116
      $region115: #{low_enhance_net.1} parent=83 // pred_region
        %p1547 = scmp.lt.s32.totalorder %s27, 1
        %s1548 = scalar_select %p1547, %s27, 1
        %s1549 = smul.addr %s1548, 2
        %s1550 = scalar_lea.vmem %s14, %s1549
      $region116: #{low_enhance_net.1} parent=83 // pred_fallthru
        _
    $region84: #{low_enhance_net.1} parent=5 // pred_fallthru
      _
  $region6: #{low_enhance_net.1} parent=0 // loop_footer
    %s25 = sadd.s32 1, %s21
  $region7: #{low_enhance_net.1} parent=0 // loop_footer_branch
    %20 = sbr.rel target = $region3
  $region8: #{low_enhance_net.1} parent=0 // loop_exit
    _

</llo_original>
